<compile_context>
chip_gen: v6e
topology: v6e:2x2x1
jax: 0.10.0
libtpu: 0.0.40
codegen_flags: <defaults>
</compile_context>

<pallas_src>
import functools
import math

import jax
import jax.numpy as jnp
import numpy as np
from jax.experimental import pallas as pl
from jax.experimental.pallas import tpu as pltpu

_LANE = 128
_SUBLANE = 8


def _round_up(x, m):
    return ((x + m - 1) // m) * m


def _dot_bf16(a, b):
    # bf16 operands on the MXU, f32 accumulation.
    return jnp.dot(a.astype(jnp.bfloat16), b, preferred_element_type=jnp.float32)


def lw_ae_kernel(x_ref,
                 w1, b1, w2, b2, w3, b3,      # encoder params (in,out)/(1,out)
                 w4, b4, w5, b5, w6, b6,      # decoder params (in,out)/(1,out)
                 enc_ref, dec_ref):
    """Fused MLP autoencoder forward for one batch tile. Weights resident in VMEM."""
    x = x_ref[...]                                              # (TB, d0p) bf16

    # ---- encoder ----
    h = jnp.maximum(_dot_bf16(x, w1[...]) + b1[...], 0.0)       # Linear(d0,d1)+ReLU
    h = jnp.maximum(_dot_bf16(h, w2[...]) + b2[...], 0.0)       # Linear(d1,d2)+ReLU
    enc = _dot_bf16(h, w3[...]) + b3[...]                       # Linear(d2,d3)
    enc_ref[...] = enc.astype(enc_ref.dtype)

    # ---- decoder (reversed decoder list) ----
    d = jnp.maximum(_dot_bf16(enc, w4[...]) + b4[...], 0.0)     # Linear(d3,d2)+ReLU
    d = jnp.maximum(_dot_bf16(d, w5[...]) + b5[...], 0.0)       # Linear(d2,d1)+ReLU
    dec = _dot_bf16(d, w6[...]) + b6[...]                       # Linear(d1,d0)
    dec_ref[...] = dec.astype(dec_ref.dtype)


def lw_ae_forward(x_nchw, params, *, tile_b=256, single_buffer_weights=True):
    """x_nchw: [N, C, H, W] float32. params: list of 6 (W[in,out], b[1,out]) f32."""
    N, C, H, W = x_nchw.shape
    d0 = C * H * W
    d3 = params[2][0].shape[1]

    # --- lane-pad every feature dim to a multiple of 128 (zeros => exact) ---
    padded = []
    for (w, b) in params:
        din, dout = w.shape
        dinp, doutp = _round_up(din, _LANE), _round_up(dout, _LANE)
        wp = jnp.zeros((dinp, doutp), jnp.bfloat16).at[:din, :dout].set(
            w.astype(jnp.bfloat16))
        bp = jnp.zeros((1, doutp), jnp.float32).at[:, :dout].set(
            b.astype(jnp.float32))
        padded.append((wp, bp))
    d0p = padded[0][0].shape[0]
    d3p = padded[2][0].shape[1]

    # --- batch tiling: TB rows per grid step, batch zero-padded to TB multiple ---
    TB = min(_round_up(tile_b, _SUBLANE), _round_up(N, _SUBLANE))
    Np = _round_up(N, TB)
    grid = (Np // TB,)

    x_flat = x_nchw.reshape(N, d0).astype(jnp.bfloat16)          # torch Flatten
    x_pad = jnp.zeros((Np, d0p), jnp.bfloat16).at[:N, :d0].set(x_flat)

    def weight_spec(arr):
        # Grid-invariant: constant block index; single-buffer to save VMEM.
        if single_buffer_weights:
            return pl.BlockSpec(arr.shape, lambda i: (0,) * arr.ndim,
                                pipeline_mode=pl.Buffered(1))
        return pl.BlockSpec(arr.shape, lambda i: (0,) * arr.ndim)

    in_specs = [pl.BlockSpec((TB, d0p), lambda i: (i, 0))]
    flat_params = []
    for (w, b) in padded:
        in_specs += [weight_spec(w), weight_spec(b)]
        flat_params += [w, b]

    out_specs = [
        pl.BlockSpec((TB, d3p), lambda i: (i, 0)),
        pl.BlockSpec((TB, d0p), lambda i: (i, 0)),
    ]

    flops = 2 * Np * sum(w.shape[0] * w.shape[1] for (w, _) in padded)
    bytes_accessed = (x_pad.size * 2 + Np * d3p * 4 + Np * d0p * 4
                      + sum(w.size * 2 + b.size * 4 for (w, b) in padded))

    enc_p, dec_p = pl.pallas_call(
        lw_ae_kernel,
        grid=grid,
        in_specs=in_specs,
        out_specs=out_specs,
        out_shape=(
            jax.ShapeDtypeStruct((Np, d3p), jnp.float32),
            jax.ShapeDtypeStruct((Np, d0p), jnp.float32),
        ),
        compiler_params=pltpu.CompilerParams(
            dimension_semantics=("parallel",),
            vmem_limit_bytes=48 * 1024 * 1024),
        cost_estimate=pl.CostEstimate(
            flops=flops, transcendentals=0, bytes_accessed=bytes_accessed),
    )(x_pad, *flat_params)

    enc = enc_p[:N, :d3]
    decoded = dec_p[:N, :d0].reshape(N, C, H, W)                 # torch Reshape([C,H,W])
    return enc, decoded


def init_params(key, dims):
    """W ~ N(0, 0.01) (weights_init), bias ~ U(-1/sqrt(fan_in), 1/sqrt(fan_in))
    (torch Linear default). Forward-order layers:
    enc d0->d1, d1->d2, d2->d3; dec d3->d2, d2->d1, d1->d0."""
    layer_dims = [(dims[0], dims[1]), (dims[1], dims[2]), (dims[2], dims[3]),
                  (dims[3], dims[2]), (dims[2], dims[1]), (dims[1], dims[0])]
    params = []
    for (din, dout) in layer_dims:
        key, kw, kb = jax.random.split(key, 3)
        w = 0.01 * jax.random.normal(kw, (din, dout), dtype=jnp.float32)
        bound = 1.0 / math.sqrt(din)
        b = jax.random.uniform(kb, (1, dout), dtype=jnp.float32,
                               minval=-bound, maxval=bound)
        params.append((w, b))
    return params


def reference_forward(x_nchw, params):
    """Pure-JAX f32 reference (eval-mode dropout = identity)."""
    N, C, H, W = x_nchw.shape
    x = x_nchw.reshape(N, -1)
    (w1, b1), (w2, b2), (w3, b3), (w4, b4), (w5, b5), (w6, b6) = params
    h = jnp.maximum(x @ w1 + b1, 0.0)
    h = jnp.maximum(h @ w2 + b2, 0.0)
    enc = h @ w3 + b3
    d = jnp.maximum(enc @ w4 + b4, 0.0)
    d = jnp.maximum(d @ w5 + b5, 0.0)
    dec = d @ w6 + b6
    return enc, dec.reshape(N, C, H, W)


if __name__ == "__main__":
    # Small shapes consistent with the module: dims[0] must equal C*H*W.
    # N=30 with tile_b=8 exercises batch padding + a multi-step pipelined grid.
    N, C, H, W = 30, 4, 4, 4           # image path, C*H*W = 64
    dims = [64, 32, 128, 16]           # analogous to [500, 500, 2000, 10]

    key = jax.random.PRNGKey(0)
    key, kx = jax.random.split(key)
    x = jax.random.normal(kx, (N, C, H, W), dtype=jnp.float32)
    params = init_params(key, dims)

    try:
        fwd = jax.jit(functools.partial(lw_ae_forward, tile_b=8))
        enc, dec = fwd(x, params)
        jax.block_until_ready((enc, dec))
    except Exception:
        # Fallback if pl.Buffered(1) on grid-invariant weights is rejected by
        # this jax/Mosaic version: use default (double-buffered) weight specs.
        fwd = jax.jit(functools.partial(lw_ae_forward, tile_b=8,
                                        single_buffer_weights=False))
        enc, dec = fwd(x, params)
        jax.block_until_ready((enc, dec))

    enc_ref, dec_ref = reference_forward(x, params)
    assert enc.shape == (N, dims[3]) and dec.shape == (N, C, H, W)
    np.testing.assert_allclose(np.asarray(enc), np.asarray(enc_ref),
                               rtol=2e-2, atol=2e-2)
    np.testing.assert_allclose(np.asarray(dec), np.asarray(dec_ref),
                               rtol=2e-2, atol=2e-2)
    print("KERNEL_OK")
</pallas_src>

<mosaic_0001>
module attributes {stable_mosaic.version = 11 : i64} {
  func.func @lw_ae_kernel(%arg0: i32, %arg1: memref<8x128xbf16, #tpu.memory_space<vmem>>, %arg2: memref<128x128xbf16, #tpu.memory_space<vmem>>, %arg3: memref<1x128xf32, #tpu.memory_space<vmem>>, %arg4: memref<128x128xbf16, #tpu.memory_space<vmem>>, %arg5: memref<1x128xf32, #tpu.memory_space<vmem>>, %arg6: memref<128x128xbf16, #tpu.memory_space<vmem>>, %arg7: memref<1x128xf32, #tpu.memory_space<vmem>>, %arg8: memref<128x128xbf16, #tpu.memory_space<vmem>>, %arg9: memref<1x128xf32, #tpu.memory_space<vmem>>, %arg10: memref<128x128xbf16, #tpu.memory_space<vmem>>, %arg11: memref<1x128xf32, #tpu.memory_space<vmem>>, %arg12: memref<128x128xbf16, #tpu.memory_space<vmem>>, %arg13: memref<1x128xf32, #tpu.memory_space<vmem>>, %arg14: memref<8x128xf32, #tpu.memory_space<vmem>>, %arg15: memref<8x128xf32, #tpu.memory_space<vmem>>) attributes {dimension_semantics = [#tpu.dimension_semantics<parallel>], iteration_bounds = array<i64: 4>, scalar_prefetch = 0 : i64, scratch_operands = 0 : i64, tpu.core_type = #tpu.core_type<tc>, window_params = [{transform_indices = @transform_0, window_bounds = array<i64: 8, 128>}, {pipeline_mode = #tpu.pipeline_mode<synchronous>, transform_indices = @transform_1, window_bounds = array<i64: 128, 128>}, {pipeline_mode = #tpu.pipeline_mode<synchronous>, transform_indices = @transform_2, window_bounds = array<i64: 1, 128>}, {pipeline_mode = #tpu.pipeline_mode<synchronous>, transform_indices = @transform_3, window_bounds = array<i64: 128, 128>}, {pipeline_mode = #tpu.pipeline_mode<synchronous>, transform_indices = @transform_4, window_bounds = array<i64: 1, 128>}, {pipeline_mode = #tpu.pipeline_mode<synchronous>, transform_indices = @transform_5, window_bounds = array<i64: 128, 128>}, {pipeline_mode = #tpu.pipeline_mode<synchronous>, transform_indices = @transform_6, window_bounds = array<i64: 1, 128>}, {pipeline_mode = #tpu.pipeline_mode<synchronous>, transform_indices = @transform_7, window_bounds = array<i64: 128, 128>}, {pipeline_mode = #tpu.pipeline_mode<synchronous>, transform_indices = @transform_8, window_bounds = array<i64: 1, 128>}, {pipeline_mode = #tpu.pipeline_mode<synchronous>, transform_indices = @transform_9, window_bounds = array<i64: 128, 128>}, {pipeline_mode = #tpu.pipeline_mode<synchronous>, transform_indices = @transform_10, window_bounds = array<i64: 1, 128>}, {pipeline_mode = #tpu.pipeline_mode<synchronous>, transform_indices = @transform_11, window_bounds = array<i64: 128, 128>}, {pipeline_mode = #tpu.pipeline_mode<synchronous>, transform_indices = @transform_12, window_bounds = array<i64: 1, 128>}, {transform_indices = @transform_13, window_bounds = array<i64: 8, 128>}, {transform_indices = @transform_14, window_bounds = array<i64: 8, 128>}]} {
    %c0 = arith.constant 0 : index
    %c0_0 = arith.constant 0 : index
    %0 = vector.load %arg1[%c0, %c0_0] : memref<8x128xbf16, #tpu.memory_space<vmem>>, vector<8x128xbf16>
    %c0_1 = arith.constant 0 : index
    %c0_2 = arith.constant 0 : index
    %1 = vector.load %arg2[%c0_1, %c0_2] : memref<128x128xbf16, #tpu.memory_space<vmem>>, vector<128x128xbf16>
    %cst = arith.constant dense<0.000000e+00> : vector<8x128xf32>
    %2 = tpu.matmul %0, %1, %cst {dimension_numbers = #tpu.dot_dimension_numbers<[1], [0], [0], [1], [0, 0, 1, 1], [], []>} : vector<8x128xbf16>, vector<128x128xbf16>, vector<8x128xf32> -> vector<8x128xf32>
    %c0_3 = arith.constant 0 : index
    %c0_4 = arith.constant 0 : index
    %3 = vector.load %arg3[%c0_3, %c0_4] : memref<1x128xf32, #tpu.memory_space<vmem>>, vector<1x128xf32>
    %4 = vector.broadcast %3 : vector<1x128xf32> to vector<8x128xf32>
    %5 = arith.addf %2, %4 : vector<8x128xf32>
    %cst_5 = arith.constant 0.000000e+00 : f32
    %6 = vector.broadcast %cst_5 : f32 to vector<8x128xf32>
    %7 = arith.maximumf %5, %6 : vector<8x128xf32>
    %c0_6 = arith.constant 0 : index
    %c0_7 = arith.constant 0 : index
    %8 = vector.load %arg4[%c0_6, %c0_7] : memref<128x128xbf16, #tpu.memory_space<vmem>>, vector<128x128xbf16>
    %9 = arith.truncf %7 : vector<8x128xf32> to vector<8x128xbf16>
    %cst_8 = arith.constant dense<0.000000e+00> : vector<8x128xf32>
    %10 = tpu.matmul %9, %8, %cst_8 {dimension_numbers = #tpu.dot_dimension_numbers<[1], [0], [0], [1], [0, 0, 1, 1], [], []>} : vector<8x128xbf16>, vector<128x128xbf16>, vector<8x128xf32> -> vector<8x128xf32>
    %c0_9 = arith.constant 0 : index
    %c0_10 = arith.constant 0 : index
    %11 = vector.load %arg5[%c0_9, %c0_10] : memref<1x128xf32, #tpu.memory_space<vmem>>, vector<1x128xf32>
    %12 = vector.broadcast %11 : vector<1x128xf32> to vector<8x128xf32>
    %13 = arith.addf %10, %12 : vector<8x128xf32>
    %cst_11 = arith.constant 0.000000e+00 : f32
    %14 = vector.broadcast %cst_11 : f32 to vector<8x128xf32>
    %15 = arith.maximumf %13, %14 : vector<8x128xf32>
    %c0_12 = arith.constant 0 : index
    %c0_13 = arith.constant 0 : index
    %16 = vector.load %arg6[%c0_12, %c0_13] : memref<128x128xbf16, #tpu.memory_space<vmem>>, vector<128x128xbf16>
    %17 = arith.truncf %15 : vector<8x128xf32> to vector<8x128xbf16>
    %cst_14 = arith.constant dense<0.000000e+00> : vector<8x128xf32>
    %18 = tpu.matmul %17, %16, %cst_14 {dimension_numbers = #tpu.dot_dimension_numbers<[1], [0], [0], [1], [0, 0, 1, 1], [], []>} : vector<8x128xbf16>, vector<128x128xbf16>, vector<8x128xf32> -> vector<8x128xf32>
    %c0_15 = arith.constant 0 : index
    %c0_16 = arith.constant 0 : index
    %19 = vector.load %arg7[%c0_15, %c0_16] : memref<1x128xf32, #tpu.memory_space<vmem>>, vector<1x128xf32>
    %20 = vector.broadcast %19 : vector<1x128xf32> to vector<8x128xf32>
    %21 = arith.addf %18, %20 : vector<8x128xf32>
    %c0_17 = arith.constant 0 : index
    %c0_18 = arith.constant 0 : index
    %22 = vector.load %arg14[%c0_17, %c0_18] : memref<8x128xf32, #tpu.memory_space<vmem>>, vector<8x128xf32>
    tpu.vector_store %arg14[%c0_17, %c0_18], %21 {strides = array<i32>} : memref<8x128xf32, #tpu.memory_space<vmem>>, vector<8x128xf32>,
    %c0_19 = arith.constant 0 : index
    %c0_20 = arith.constant 0 : index
    %23 = vector.load %arg8[%c0_19, %c0_20] : memref<128x128xbf16, #tpu.memory_space<vmem>>, vector<128x128xbf16>
    %24 = arith.truncf %21 : vector<8x128xf32> to vector<8x128xbf16>
    %cst_21 = arith.constant dense<0.000000e+00> : vector<8x128xf32>
    %25 = tpu.matmul %24, %23, %cst_21 {dimension_numbers = #tpu.dot_dimension_numbers<[1], [0], [0], [1], [0, 0, 1, 1], [], []>} : vector<8x128xbf16>, vector<128x128xbf16>, vector<8x128xf32> -> vector<8x128xf32>
    %c0_22 = arith.constant 0 : index
    %c0_23 = arith.constant 0 : index
    %26 = vector.load %arg9[%c0_22, %c0_23] : memref<1x128xf32, #tpu.memory_space<vmem>>, vector<1x128xf32>
    %27 = vector.broadcast %26 : vector<1x128xf32> to vector<8x128xf32>
    %28 = arith.addf %25, %27 : vector<8x128xf32>
    %cst_24 = arith.constant 0.000000e+00 : f32
    %29 = vector.broadcast %cst_24 : f32 to vector<8x128xf32>
    %30 = arith.maximumf %28, %29 : vector<8x128xf32>
    %c0_25 = arith.constant 0 : index
    %c0_26 = arith.constant 0 : index
    %31 = vector.load %arg10[%c0_25, %c0_26] : memref<128x128xbf16, #tpu.memory_space<vmem>>, vector<128x128xbf16>
    %32 = arith.truncf %30 : vector<8x128xf32> to vector<8x128xbf16>
    %cst_27 = arith.constant dense<0.000000e+00> : vector<8x128xf32>
    %33 = tpu.matmul %32, %31, %cst_27 {dimension_numbers = #tpu.dot_dimension_numbers<[1], [0], [0], [1], [0, 0, 1, 1], [], []>} : vector<8x128xbf16>, vector<128x128xbf16>, vector<8x128xf32> -> vector<8x128xf32>
    %c0_28 = arith.constant 0 : index
    %c0_29 = arith.constant 0 : index
    %34 = vector.load %arg11[%c0_28, %c0_29] : memref<1x128xf32, #tpu.memory_space<vmem>>, vector<1x128xf32>
    %35 = vector.broadcast %34 : vector<1x128xf32> to vector<8x128xf32>
    %36 = arith.addf %33, %35 : vector<8x128xf32>
    %cst_30 = arith.constant 0.000000e+00 : f32
    %37 = vector.broadcast %cst_30 : f32 to vector<8x128xf32>
    %38 = arith.maximumf %36, %37 : vector<8x128xf32>
    %c0_31 = arith.constant 0 : index
    %c0_32 = arith.constant 0 : index
    %39 = vector.load %arg12[%c0_31, %c0_32] : memref<128x128xbf16, #tpu.memory_space<vmem>>, vector<128x128xbf16>
    %40 = arith.truncf %38 : vector<8x128xf32> to vector<8x128xbf16>
    %cst_33 = arith.constant dense<0.000000e+00> : vector<8x128xf32>
    %41 = tpu.matmul %40, %39, %cst_33 {dimension_numbers = #tpu.dot_dimension_numbers<[1], [0], [0], [1], [0, 0, 1, 1], [], []>} : vector<8x128xbf16>, vector<128x128xbf16>, vector<8x128xf32> -> vector<8x128xf32>
    %c0_34 = arith.constant 0 : index
    %c0_35 = arith.constant 0 : index
    %42 = vector.load %arg13[%c0_34, %c0_35] : memref<1x128xf32, #tpu.memory_space<vmem>>, vector<1x128xf32>
    %43 = vector.broadcast %42 : vector<1x128xf32> to vector<8x128xf32>
    %44 = arith.addf %41, %43 : vector<8x128xf32>
    %c0_36 = arith.constant 0 : index
    %c0_37 = arith.constant 0 : index
    %45 = vector.load %arg15[%c0_36, %c0_37] : memref<8x128xf32, #tpu.memory_space<vmem>>, vector<8x128xf32>
    tpu.vector_store %arg15[%c0_36, %c0_37], %44 {strides = array<i32>} : memref<8x128xf32, #tpu.memory_space<vmem>>, vector<8x128xf32>,
    return
  }
  func.func @transform_0(%arg0: i32) -> (i32, i32) {
    %c0_i32 = arith.constant 0 : i32
    %c0_i32_0 = arith.constant 0 : i32
    return %arg0, %c0_i32 : i32, i32
  }
  func.func @transform_1(%arg0: i32) -> (i32, i32) {
    %c0_i32 = arith.constant 0 : i32
    %c0_i32_0 = arith.constant 0 : i32
    %c0_i32_1 = arith.constant 0 : i32
    return %c0_i32, %c0_i32_0 : i32, i32
  }
  func.func @transform_2(%arg0: i32) -> (i32, i32) {
    %c0_i32 = arith.constant 0 : i32
    %c0_i32_0 = arith.constant 0 : i32
    %c0_i32_1 = arith.constant 0 : i32
    return %c0_i32, %c0_i32_0 : i32, i32
  }
  func.func @transform_3(%arg0: i32) -> (i32, i32) {
    %c0_i32 = arith.constant 0 : i32
    %c0_i32_0 = arith.constant 0 : i32
    %c0_i32_1 = arith.constant 0 : i32
    return %c0_i32, %c0_i32_0 : i32, i32
  }
  func.func @transform_4(%arg0: i32) -> (i32, i32) {
    %c0_i32 = arith.constant 0 : i32
    %c0_i32_0 = arith.constant 0 : i32
    %c0_i32_1 = arith.constant 0 : i32
    return %c0_i32, %c0_i32_0 : i32, i32
  }
  func.func @transform_5(%arg0: i32) -> (i32, i32) {
    %c0_i32 = arith.constant 0 : i32
    %c0_i32_0 = arith.constant 0 : i32
    %c0_i32_1 = arith.constant 0 : i32
    return %c0_i32, %c0_i32_0 : i32, i32
  }
  func.func @transform_6(%arg0: i32) -> (i32, i32) {
    %c0_i32 = arith.constant 0 : i32
    %c0_i32_0 = arith.constant 0 : i32
    %c0_i32_1 = arith.constant 0 : i32
    return %c0_i32, %c0_i32_0 : i32, i32
  }
  func.func @transform_7(%arg0: i32) -> (i32, i32) {
    %c0_i32 = arith.constant 0 : i32
    %c0_i32_0 = arith.constant 0 : i32
    %c0_i32_1 = arith.constant 0 : i32
    return %c0_i32, %c0_i32_0 : i32, i32
  }
  func.func @transform_8(%arg0: i32) -> (i32, i32) {
    %c0_i32 = arith.constant 0 : i32
    %c0_i32_0 = arith.constant 0 : i32
    %c0_i32_1 = arith.constant 0 : i32
    return %c0_i32, %c0_i32_0 : i32, i32
  }
  func.func @transform_9(%arg0: i32) -> (i32, i32) {
    %c0_i32 = arith.constant 0 : i32
    %c0_i32_0 = arith.constant 0 : i32
    %c0_i32_1 = arith.constant 0 : i32
    return %c0_i32, %c0_i32_0 : i32, i32
  }
  func.func @transform_10(%arg0: i32) -> (i32, i32) {
    %c0_i32 = arith.constant 0 : i32
    %c0_i32_0 = arith.constant 0 : i32
    %c0_i32_1 = arith.constant 0 : i32
    return %c0_i32, %c0_i32_0 : i32, i32
  }
  func.func @transform_11(%arg0: i32) -> (i32, i32) {
    %c0_i32 = arith.constant 0 : i32
    %c0_i32_0 = arith.constant 0 : i32
    %c0_i32_1 = arith.constant 0 : i32
    return %c0_i32, %c0_i32_0 : i32, i32
  }
  func.func @transform_12(%arg0: i32) -> (i32, i32) {
    %c0_i32 = arith.constant 0 : i32
    %c0_i32_0 = arith.constant 0 : i32
    %c0_i32_1 = arith.constant 0 : i32
    return %c0_i32, %c0_i32_0 : i32, i32
  }
  func.func @transform_13(%arg0: i32) -> (i32, i32) {
    %c0_i32 = arith.constant 0 : i32
    %c0_i32_0 = arith.constant 0 : i32
    return %arg0, %c0_i32 : i32, i32
  }
  func.func @transform_14(%arg0: i32) -> (i32, i32) {
    %c0_i32 = arith.constant 0 : i32
    %c0_i32_0 = arith.constant 0 : i32
    return %arg0, %c0_i32 : i32, i32
  }
}

module attributes {stable_mosaic.version = 11 : i64} {
  func.func @lw_ae_kernel(%arg0: i32, %arg1: memref<8x128xbf16, #tpu.memory_space<vmem>>, %arg2: memref<128x128xbf16, #tpu.memory_space<vmem>>, %arg3: memref<1x128xf32, #tpu.memory_space<vmem>>, %arg4: memref<128x128xbf16, #tpu.memory_space<vmem>>, %arg5: memref<1x128xf32, #tpu.memory_space<vmem>>, %arg6: memref<128x128xbf16, #tpu.memory_space<vmem>>, %arg7: memref<1x128xf32, #tpu.memory_space<vmem>>, %arg8: memref<128x128xbf16, #tpu.memory_space<vmem>>, %arg9: memref<1x128xf32, #tpu.memory_space<vmem>>, %arg10: memref<128x128xbf16, #tpu.memory_space<vmem>>, %arg11: memref<1x128xf32, #tpu.memory_space<vmem>>, %arg12: memref<128x128xbf16, #tpu.memory_space<vmem>>, %arg13: memref<1x128xf32, #tpu.memory_space<vmem>>, %arg14: memref<8x128xf32, #tpu.memory_space<vmem>>, %arg15: memref<8x128xf32, #tpu.memory_space<vmem>>) attributes {dimension_semantics = [#tpu.dimension_semantics<parallel>], iteration_bounds = array<i64: 4>, scalar_prefetch = 0 : i64, scratch_operands = 0 : i64, tpu.core_type = #tpu.core_type<tc>, window_params = [{transform_indices = @transform_0, window_bounds = array<i64: 8, 128>}, {pipeline_mode = #tpu.pipeline_mode<synchronous>, transform_indices = @transform_1, window_bounds = array<i64: 128, 128>}, {pipeline_mode = #tpu.pipeline_mode<synchronous>, transform_indices = @transform_2, window_bounds = array<i64: 1, 128>}, {pipeline_mode = #tpu.pipeline_mode<synchronous>, transform_indices = @transform_3, window_bounds = array<i64: 128, 128>}, {pipeline_mode = #tpu.pipeline_mode<synchronous>, transform_indices = @transform_4, window_bounds = array<i64: 1, 128>}, {pipeline_mode = #tpu.pipeline_mode<synchronous>, transform_indices = @transform_5, window_bounds = array<i64: 128, 128>}, {pipeline_mode = #tpu.pipeline_mode<synchronous>, transform_indices = @transform_6, window_bounds = array<i64: 1, 128>}, {pipeline_mode = #tpu.pipeline_mode<synchronous>, transform_indices = @transform_7, window_bounds = array<i64: 128, 128>}, {pipeline_mode = #tpu.pipeline_mode<synchronous>, transform_indices = @transform_8, window_bounds = array<i64: 1, 128>}, {pipeline_mode = #tpu.pipeline_mode<synchronous>, transform_indices = @transform_9, window_bounds = array<i64: 128, 128>}, {pipeline_mode = #tpu.pipeline_mode<synchronous>, transform_indices = @transform_10, window_bounds = array<i64: 1, 128>}, {pipeline_mode = #tpu.pipeline_mode<synchronous>, transform_indices = @transform_11, window_bounds = array<i64: 128, 128>}, {pipeline_mode = #tpu.pipeline_mode<synchronous>, transform_indices = @transform_12, window_bounds = array<i64: 1, 128>}, {transform_indices = @transform_13, window_bounds = array<i64: 8, 128>}, {transform_indices = @transform_14, window_bounds = array<i64: 8, 128>}]} {
    %c0 = arith.constant 0 : index
    %c0_0 = arith.constant 0 : index
    %0 = vector.load %arg1[%c0, %c0_0] : memref<8x128xbf16, #tpu.memory_space<vmem>>, vector<8x128xbf16>
    %c0_1 = arith.constant 0 : index
    %c0_2 = arith.constant 0 : index
    %1 = vector.load %arg2[%c0_1, %c0_2] : memref<128x128xbf16, #tpu.memory_space<vmem>>, vector<128x128xbf16>
    %cst = arith.constant dense<0.000000e+00> : vector<8x128xf32>
    %2 = tpu.matmul %0, %1, %cst {dimension_numbers = #tpu.dot_dimension_numbers<[1], [0], [0], [1], [0, 0, 1, 1], [], []>} : vector<8x128xbf16>, vector<128x128xbf16>, vector<8x128xf32> -> vector<8x128xf32>
    %c0_3 = arith.constant 0 : index
    %c0_4 = arith.constant 0 : index
    %3 = vector.load %arg3[%c0_3, %c0_4] : memref<1x128xf32, #tpu.memory_space<vmem>>, vector<1x128xf32>
    %4 = vector.broadcast %3 : vector<1x128xf32> to vector<8x128xf32>
    %5 = arith.addf %2, %4 : vector<8x128xf32>
    %cst_5 = arith.constant 0.000000e+00 : f32
    %6 = vector.broadcast %cst_5 : f32 to vector<8x128xf32>
    %7 = arith.maximumf %5, %6 : vector<8x128xf32>
    %c0_6 = arith.constant 0 : index
    %c0_7 = arith.constant 0 : index
    %8 = vector.load %arg4[%c0_6, %c0_7] : memref<128x128xbf16, #tpu.memory_space<vmem>>, vector<128x128xbf16>
    %9 = arith.truncf %7 : vector<8x128xf32> to vector<8x128xbf16>
    %cst_8 = arith.constant dense<0.000000e+00> : vector<8x128xf32>
    %10 = tpu.matmul %9, %8, %cst_8 {dimension_numbers = #tpu.dot_dimension_numbers<[1], [0], [0], [1], [0, 0, 1, 1], [], []>} : vector<8x128xbf16>, vector<128x128xbf16>, vector<8x128xf32> -> vector<8x128xf32>
    %c0_9 = arith.constant 0 : index
    %c0_10 = arith.constant 0 : index
    %11 = vector.load %arg5[%c0_9, %c0_10] : memref<1x128xf32, #tpu.memory_space<vmem>>, vector<1x128xf32>
    %12 = vector.broadcast %11 : vector<1x128xf32> to vector<8x128xf32>
    %13 = arith.addf %10, %12 : vector<8x128xf32>
    %cst_11 = arith.constant 0.000000e+00 : f32
    %14 = vector.broadcast %cst_11 : f32 to vector<8x128xf32>
    %15 = arith.maximumf %13, %14 : vector<8x128xf32>
    %c0_12 = arith.constant 0 : index
    %c0_13 = arith.constant 0 : index
    %16 = vector.load %arg6[%c0_12, %c0_13] : memref<128x128xbf16, #tpu.memory_space<vmem>>, vector<128x128xbf16>
    %17 = arith.truncf %15 : vector<8x128xf32> to vector<8x128xbf16>
    %cst_14 = arith.constant dense<0.000000e+00> : vector<8x128xf32>
    %18 = tpu.matmul %17, %16, %cst_14 {dimension_numbers = #tpu.dot_dimension_numbers<[1], [0], [0], [1], [0, 0, 1, 1], [], []>} : vector<8x128xbf16>, vector<128x128xbf16>, vector<8x128xf32> -> vector<8x128xf32>
    %c0_15 = arith.constant 0 : index
    %c0_16 = arith.constant 0 : index
    %19 = vector.load %arg7[%c0_15, %c0_16] : memref<1x128xf32, #tpu.memory_space<vmem>>, vector<1x128xf32>
    %20 = vector.broadcast %19 : vector<1x128xf32> to vector<8x128xf32>
    %21 = arith.addf %18, %20 : vector<8x128xf32>
    %c0_17 = arith.constant 0 : index
    %c0_18 = arith.constant 0 : index
    %22 = vector.load %arg14[%c0_17, %c0_18] : memref<8x128xf32, #tpu.memory_space<vmem>>, vector<8x128xf32>
    tpu.vector_store %arg14[%c0_17, %c0_18], %21 {strides = array<i32>} : memref<8x128xf32, #tpu.memory_space<vmem>>, vector<8x128xf32>,
    %c0_19 = arith.constant 0 : index
    %c0_20 = arith.constant 0 : index
    %23 = vector.load %arg8[%c0_19, %c0_20] : memref<128x128xbf16, #tpu.memory_space<vmem>>, vector<128x128xbf16>
    %24 = arith.truncf %21 : vector<8x128xf32> to vector<8x128xbf16>
    %cst_21 = arith.constant dense<0.000000e+00> : vector<8x128xf32>
    %25 = tpu.matmul %24, %23, %cst_21 {dimension_numbers = #tpu.dot_dimension_numbers<[1], [0], [0], [1], [0, 0, 1, 1], [], []>} : vector<8x128xbf16>, vector<128x128xbf16>, vector<8x128xf32> -> vector<8x128xf32>
    %c0_22 = arith.constant 0 : index
    %c0_23 = arith.constant 0 : index
    %26 = vector.load %arg9[%c0_22, %c0_23] : memref<1x128xf32, #tpu.memory_space<vmem>>, vector<1x128xf32>
    %27 = vector.broadcast %26 : vector<1x128xf32> to vector<8x128xf32>
    %28 = arith.addf %25, %27 : vector<8x128xf32>
    %cst_24 = arith.constant 0.000000e+00 : f32
    %29 = vector.broadcast %cst_24 : f32 to vector<8x128xf32>
    %30 = arith.maximumf %28, %29 : vector<8x128xf32>
    %c0_25 = arith.constant 0 : index
    %c0_26 = arith.constant 0 : index
    %31 = vector.load %arg10[%c0_25, %c0_26] : memref<128x128xbf16, #tpu.memory_space<vmem>>, vector<128x128xbf16>
    %32 = arith.truncf %30 : vector<8x128xf32> to vector<8x128xbf16>
    %cst_27 = arith.constant dense<0.000000e+00> : vector<8x128xf32>
    %33 = tpu.matmul %32, %31, %cst_27 {dimension_numbers = #tpu.dot_dimension_numbers<[1], [0], [0], [1], [0, 0, 1, 1], [], []>} : vector<8x128xbf16>, vector<128x128xbf16>, vector<8x128xf32> -> vector<8x128xf32>
    %c0_28 = arith.constant 0 : index
    %c0_29 = arith.constant 0 : index
    %34 = vector.load %arg11[%c0_28, %c0_29] : memref<1x128xf32, #tpu.memory_space<vmem>>, vector<1x128xf32>
    %35 = vector.broadcast %34 : vector<1x128xf32> to vector<8x128xf32>
    %36 = arith.addf %33, %35 : vector<8x128xf32>
    %cst_30 = arith.constant 0.000000e+00 : f32
    %37 = vector.broadcast %cst_30 : f32 to vector<8x128xf32>
    %38 = arith.maximumf %36, %37 : vector<8x128xf32>
    %c0_31 = arith.constant 0 : index
    %c0_32 = arith.constant 0 : index
    %39 = vector.load %arg12[%c0_31, %c0_32] : memref<128x128xbf16, #tpu.memory_space<vmem>>, vector<128x128xbf16>
    %40 = arith.truncf %38 : vector<8x128xf32> to vector<8x128xbf16>
    %cst_33 = arith.constant dense<0.000000e+00> : vector<8x128xf32>
    %41 = tpu.matmul %40, %39, %cst_33 {dimension_numbers = #tpu.dot_dimension_numbers<[1], [0], [0], [1], [0, 0, 1, 1], [], []>} : vector<8x128xbf16>, vector<128x128xbf16>, vector<8x128xf32> -> vector<8x128xf32>
    %c0_34 = arith.constant 0 : index
    %c0_35 = arith.constant 0 : index
    %42 = vector.load %arg13[%c0_34, %c0_35] : memref<1x128xf32, #tpu.memory_space<vmem>>, vector<1x128xf32>
    %43 = vector.broadcast %42 : vector<1x128xf32> to vector<8x128xf32>
    %44 = arith.addf %41, %43 : vector<8x128xf32>
    %c0_36 = arith.constant 0 : index
    %c0_37 = arith.constant 0 : index
    %45 = vector.load %arg15[%c0_36, %c0_37] : memref<8x128xf32, #tpu.memory_space<vmem>>, vector<8x128xf32>
    tpu.vector_store %arg15[%c0_36, %c0_37], %44 {strides = array<i32>} : memref<8x128xf32, #tpu.memory_space<vmem>>, vector<8x128xf32>,
    return
  }
  func.func @transform_0(%arg0: i32) -> (i32, i32) {
    %c0_i32 = arith.constant 0 : i32
    %c0_i32_0 = arith.constant 0 : i32
    return %arg0, %c0_i32 : i32, i32
  }
  func.func @transform_1(%arg0: i32) -> (i32, i32) {
    %c0_i32 = arith.constant 0 : i32
    %c0_i32_0 = arith.constant 0 : i32
    %c0_i32_1 = arith.constant 0 : i32
    return %c0_i32, %c0_i32_0 : i32, i32
  }
  func.func @transform_2(%arg0: i32) -> (i32, i32) {
    %c0_i32 = arith.constant 0 : i32
    %c0_i32_0 = arith.constant 0 : i32
    %c0_i32_1 = arith.constant 0 : i32
    return %c0_i32, %c0_i32_0 : i32, i32
  }
  func.func @transform_3(%arg0: i32) -> (i32, i32) {
    %c0_i32 = arith.constant 0 : i32
    %c0_i32_0 = arith.constant 0 : i32
    %c0_i32_1 = arith.constant 0 : i32
    return %c0_i32, %c0_i32_0 : i32, i32
  }
  func.func @transform_4(%arg0: i32) -> (i32, i32) {
    %c0_i32 = arith.constant 0 : i32
    %c0_i32_0 = arith.constant 0 : i32
    %c0_i32_1 = arith.constant 0 : i32
    return %c0_i32, %c0_i32_0 : i32, i32
  }
  func.func @transform_5(%arg0: i32) -> (i32, i32) {
    %c0_i32 = arith.constant 0 : i32
    %c0_i32_0 = arith.constant 0 : i32
    %c0_i32_1 = arith.constant 0 : i32
    return %c0_i32, %c0_i32_0 : i32, i32
  }
  func.func @transform_6(%arg0: i32) -> (i32, i32) {
    %c0_i32 = arith.constant 0 : i32
    %c0_i32_0 = arith.constant 0 : i32
    %c0_i32_1 = arith.constant 0 : i32
    return %c0_i32, %c0_i32_0 : i32, i32
  }
  func.func @transform_7(%arg0: i32) -> (i32, i32) {
    %c0_i32 = arith.constant 0 : i32
    %c0_i32_0 = arith.constant 0 : i32
    %c0_i32_1 = arith.constant 0 : i32
    return %c0_i32, %c0_i32_0 : i32, i32
  }
  func.func @transform_8(%arg0: i32) -> (i32, i32) {
    %c0_i32 = arith.constant 0 : i32
    %c0_i32_0 = arith.constant 0 : i32
    %c0_i32_1 = arith.constant 0 : i32
    return %c0_i32, %c0_i32_0 : i32, i32
  }
  func.func @transform_9(%arg0: i32) -> (i32, i32) {
    %c0_i32 = arith.constant 0 : i32
    %c0_i32_0 = arith.constant 0 : i32
    %c0_i32_1 = arith.constant 0 : i32
    return %c0_i32, %c0_i32_0 : i32, i32
  }
  func.func @transform_10(%arg0: i32) -> (i32, i32) {
    %c0_i32 = arith.constant 0 : i32
    %c0_i32_0 = arith.constant 0 : i32
    %c0_i32_1 = arith.constant 0 : i32
    return %c0_i32, %c0_i32_0 : i32, i32
  }
  func.func @transform_11(%arg0: i32) -> (i32, i32) {
    %c0_i32 = arith.constant 0 : i32
    %c0_i32_0 = arith.constant 0 : i32
    %c0_i32_1 = arith.constant 0 : i32
    return %c0_i32, %c0_i32_0 : i32, i32
  }
  func.func @transform_12(%arg0: i32) -> (i32, i32) {
    %c0_i32 = arith.constant 0 : i32
    %c0_i32_0 = arith.constant 0 : i32
    %c0_i32_1 = arith.constant 0 : i32
    return %c0_i32, %c0_i32_0 : i32, i32
  }
  func.func @transform_13(%arg0: i32) -> (i32, i32) {
    %c0_i32 = arith.constant 0 : i32
    %c0_i32_0 = arith.constant 0 : i32
    return %arg0, %c0_i32 : i32, i32
  }
  func.func @transform_14(%arg0: i32) -> (i32, i32) {
    %c0_i32 = arith.constant 0 : i32
    %c0_i32_0 = arith.constant 0 : i32
    return %arg0, %c0_i32 : i32, i32
  }
}

</mosaic_0001>

<llo_original>
// kernel: lw_ae_forward.1
$region0: #{lw_ae_forward.1}
  #allocation0 [shape = 'u32[]', space=smem, size = 0x4, offset = 0x4, fixed_abs, tag = 'smem constant byte address 0x4 - core index']
  #allocation1 [shape = 'u32[144,128]{1,0:T(1,128)}', space=vmem, size = 0x12000, scoped, tag = 'internal scratch']
  %s0 = inlined_call_operand.vmem [shape: bf16[32,128], index: 0, kind: input, shape index: {}]
  %s1 = inlined_call_operand.vmem [shape: bf16[128,128], index: 1, kind: input, shape index: {}]
  %s2 = inlined_call_operand.vmem [shape: f32[1,128], index: 2, kind: input, shape index: {}]
  %s3 = inlined_call_operand.vmem [shape: bf16[128,128], index: 3, kind: input, shape index: {}]
  %s4 = inlined_call_operand.vmem [shape: f32[1,128], index: 4, kind: input, shape index: {}]
  %s5 = inlined_call_operand.vmem [shape: bf16[128,128], index: 5, kind: input, shape index: {}]
  %s6 = inlined_call_operand.vmem [shape: f32[1,128], index: 6, kind: input, shape index: {}]
  %s7 = inlined_call_operand.vmem [shape: bf16[128,128], index: 7, kind: input, shape index: {}]
  %s8 = inlined_call_operand.vmem [shape: f32[1,128], index: 8, kind: input, shape index: {}]
  %s9 = inlined_call_operand.vmem [shape: bf16[128,128], index: 9, kind: input, shape index: {}]
  %s10 = inlined_call_operand.vmem [shape: f32[1,128], index: 10, kind: input, shape index: {}]
  %s11 = inlined_call_operand.vmem [shape: bf16[128,128], index: 11, kind: input, shape index: {}]
  %s12 = inlined_call_operand.vmem [shape: f32[1,128], index: 12, kind: input, shape index: {}]
  %s13 = inlined_call_operand.vmem [shape: f32[32,128], index: 13, kind: output, shape index: {0}]
  %s14 = inlined_call_operand.vmem [shape: f32[32,128], index: 14, kind: output, shape index: {1}]
  %15 = xla_tuple %s13, %s14
  %s16 = sld [smem:[#allocation0]]
  $region93: #{lw_ae_forward.1} parent=0
    _
  %s18 = ssub.s32 1, %s16
  %s19 = scalar_select 0, %s18, %s16
  loop: start=0, step=1, limit=6
  $region2: #{lw_ae_forward.1} parent=0 // loop_pre_header
    _
  $region3: #{lw_ae_forward.1} parent=0 // loop_header
    %s21 = sphi 0, %s25
    %p22 = scmp.ge.s32.totalorder %s21, 6
    %s31 = sphi 0, %s33
    %s34 = sphi 0, %s31
    %s35 = sphi 0, %s34
    %s51 = sphi 0, %s35
    %s55 = sphi 0, %s55
    %s57 = sphi 0, %s55
    %s58 = sphi 0, %s57
    %s72 = sphi 0, %s58
    %s76 = sphi 0, %s76
    %s78 = sphi 0, %s76
    %s79 = sphi 0, %s78
    %s93 = sphi 0, %s79
    %s97 = sphi 0, %s97
    %s99 = sphi 0, %s97
    %s100 = sphi 0, %s99
    %s114 = sphi 0, %s100
    %s118 = sphi 0, %s118
    %s120 = sphi 0, %s118
    %s121 = sphi 0, %s120
    %s135 = sphi 0, %s121
    %s139 = sphi 0, %s139
    %s141 = sphi 0, %s139
    %s142 = sphi 0, %s141
    %s156 = sphi 0, %s142
    %s160 = sphi 0, %s160
    %s162 = sphi 0, %s160
    %s163 = sphi 0, %s162
    %s177 = sphi 0, %s163
    %s181 = sphi 0, %s181
    %s183 = sphi 0, %s181
    %s184 = sphi 0, %s183
    %s198 = sphi 0, %s184
    %s202 = sphi 0, %s202
    %s204 = sphi 0, %s202
    %s205 = sphi 0, %s204
    %s219 = sphi 0, %s205
    %s223 = sphi 0, %s223
    %s225 = sphi 0, %s223
    %s226 = sphi 0, %s225
    %s240 = sphi 0, %s226
    %s244 = sphi 0, %s244
    %s246 = sphi 0, %s244
    %s247 = sphi 0, %s246
    %s261 = sphi 0, %s247
    %s265 = sphi 0, %s265
    %s267 = sphi 0, %s265
    %s268 = sphi 0, %s267
    %s282 = sphi 0, %s268
    %s286 = sphi 0, %s286
    %s288 = sphi 0, %s286
    %s289 = sphi 0, %s288
    %s303 = sphi 0, %s289
    %s309 = sphi 0, %s311
    %s312 = sphi 0, %s309
    %s313 = sphi 0, %s312
    %s329 = sphi 0, %s313
    %s335 = sphi 0, %s337
    %s338 = sphi 0, %s335
    %s339 = sphi 0, %s338
    %s355 = sphi 0, %s339
  $region4: #{lw_ae_forward.1} parent=0 // loop_header_branch
    %24 = sbr.rel (%p22) target = $region8
  $region5: #{lw_ae_forward.1} parent=0 // loop_body
    %s26 = ssub.s32 %s21, 1
    %s27 = ssub.s32 %s21, 2
    %s28 = sadd.s32 %s21, 1
    %s29 = ssub.s32 %s21, %s28
    %p30 = scmp.eq.s32.totalorder %s29, 0
    %s32 = sadd.s32 %s31, 1
    %s33 = scalar_select %p30, %s31, %s32
    %p36 = pneg %p30
    %p37 = scmp.eq.s32.totalorder %s21, 3
    %p38 = por %p36, %p37
    %p39 = scmp.ne.s32.totalorder %s31, %s34
    %p40 = scmp.eq.s32.totalorder %s21, 0
    %p41 = por %p39, %p40
    %p42 = scmp.ne.s32.totalorder %s31, %s34
    %p43 = scmp.eq.s32.totalorder %s26, 3
    %p44 = por %p42, %p43
    %p45 = scmp.ne.s32.totalorder %s34, %s35
    %p46 = scmp.eq.s32.totalorder %s26, 0
    %p47 = por %p45, %p46
    %p48 = scmp.ne.s32.totalorder %s34, %s35
    %p49 = scmp.eq.s32.totalorder %s27, 3
    %p50 = por %p48, %p49
    %p52 = scmp.ne.s32.totalorder %s35, %s51
    %p53 = scmp.eq.s32.totalorder %s27, 0
    %p54 = por %p52, %p53
    %s56 = sadd.s32 %s55, 1
    %p59 = scmp.eq.s32.totalorder %s21, 3
    %p60 = scmp.ne.s32.totalorder %s55, %s57
    %p61 = scmp.eq.s32.totalorder %s21, 0
    %p62 = por %p60, %p61
    %p63 = scmp.ne.s32.totalorder %s55, %s57
    %p64 = scmp.eq.s32.totalorder %s26, 3
    %p65 = por %p63, %p64
    %p66 = scmp.ne.s32.totalorder %s57, %s58
    %p67 = scmp.eq.s32.totalorder %s26, 0
    %p68 = por %p66, %p67
    %p69 = scmp.ne.s32.totalorder %s57, %s58
    %p70 = scmp.eq.s32.totalorder %s27, 3
    %p71 = por %p69, %p70
    %p73 = scmp.ne.s32.totalorder %s58, %s72
    %p74 = scmp.eq.s32.totalorder %s27, 0
    %p75 = por %p73, %p74
    %s77 = sadd.s32 %s76, 1
    %p80 = scmp.eq.s32.totalorder %s21, 3
    %p81 = scmp.ne.s32.totalorder %s76, %s78
    %p82 = scmp.eq.s32.totalorder %s21, 0
    %p83 = por %p81, %p82
    %p84 = scmp.ne.s32.totalorder %s76, %s78
    %p85 = scmp.eq.s32.totalorder %s26, 3
    %p86 = por %p84, %p85
    %p87 = scmp.ne.s32.totalorder %s78, %s79
    %p88 = scmp.eq.s32.totalorder %s26, 0
    %p89 = por %p87, %p88
    %p90 = scmp.ne.s32.totalorder %s78, %s79
    %p91 = scmp.eq.s32.totalorder %s27, 3
    %p92 = por %p90, %p91
    %p94 = scmp.ne.s32.totalorder %s79, %s93
    %p95 = scmp.eq.s32.totalorder %s27, 0
    %p96 = por %p94, %p95
    %s98 = sadd.s32 %s97, 1
    %p101 = scmp.eq.s32.totalorder %s21, 3
    %p102 = scmp.ne.s32.totalorder %s97, %s99
    %p103 = scmp.eq.s32.totalorder %s21, 0
    %p104 = por %p102, %p103
    %p105 = scmp.ne.s32.totalorder %s97, %s99
    %p106 = scmp.eq.s32.totalorder %s26, 3
    %p107 = por %p105, %p106
    %p108 = scmp.ne.s32.totalorder %s99, %s100
    %p109 = scmp.eq.s32.totalorder %s26, 0
    %p110 = por %p108, %p109
    %p111 = scmp.ne.s32.totalorder %s99, %s100
    %p112 = scmp.eq.s32.totalorder %s27, 3
    %p113 = por %p111, %p112
    %p115 = scmp.ne.s32.totalorder %s100, %s114
    %p116 = scmp.eq.s32.totalorder %s27, 0
    %p117 = por %p115, %p116
    %s119 = sadd.s32 %s118, 1
    %p122 = scmp.eq.s32.totalorder %s21, 3
    %p123 = scmp.ne.s32.totalorder %s118, %s120
    %p124 = scmp.eq.s32.totalorder %s21, 0
    %p125 = por %p123, %p124
    %p126 = scmp.ne.s32.totalorder %s118, %s120
    %p127 = scmp.eq.s32.totalorder %s26, 3
    %p128 = por %p126, %p127
    %p129 = scmp.ne.s32.totalorder %s120, %s121
    %p130 = scmp.eq.s32.totalorder %s26, 0
    %p131 = por %p129, %p130
    %p132 = scmp.ne.s32.totalorder %s120, %s121
    %p133 = scmp.eq.s32.totalorder %s27, 3
    %p134 = por %p132, %p133
    %p136 = scmp.ne.s32.totalorder %s121, %s135
    %p137 = scmp.eq.s32.totalorder %s27, 0
    %p138 = por %p136, %p137
    %s140 = sadd.s32 %s139, 1
    %p143 = scmp.eq.s32.totalorder %s21, 3
    %p144 = scmp.ne.s32.totalorder %s139, %s141
    %p145 = scmp.eq.s32.totalorder %s21, 0
    %p146 = por %p144, %p145
    %p147 = scmp.ne.s32.totalorder %s139, %s141
    %p148 = scmp.eq.s32.totalorder %s26, 3
    %p149 = por %p147, %p148
    %p150 = scmp.ne.s32.totalorder %s141, %s142
    %p151 = scmp.eq.s32.totalorder %s26, 0
    %p152 = por %p150, %p151
    %p153 = scmp.ne.s32.totalorder %s141, %s142
    %p154 = scmp.eq.s32.totalorder %s27, 3
    %p155 = por %p153, %p154
    %p157 = scmp.ne.s32.totalorder %s142, %s156
    %p158 = scmp.eq.s32.totalorder %s27, 0
    %p159 = por %p157, %p158
    %s161 = sadd.s32 %s160, 1
    %p164 = scmp.eq.s32.totalorder %s21, 3
    %p165 = scmp.ne.s32.totalorder %s160, %s162
    %p166 = scmp.eq.s32.totalorder %s21, 0
    %p167 = por %p165, %p166
    %p168 = scmp.ne.s32.totalorder %s160, %s162
    %p169 = scmp.eq.s32.totalorder %s26, 3
    %p170 = por %p168, %p169
    %p171 = scmp.ne.s32.totalorder %s162, %s163
    %p172 = scmp.eq.s32.totalorder %s26, 0
    %p173 = por %p171, %p172
    %p174 = scmp.ne.s32.totalorder %s162, %s163
    %p175 = scmp.eq.s32.totalorder %s27, 3
    %p176 = por %p174, %p175
    %p178 = scmp.ne.s32.totalorder %s163, %s177
    %p179 = scmp.eq.s32.totalorder %s27, 0
    %p180 = por %p178, %p179
    %s182 = sadd.s32 %s181, 1
    %p185 = scmp.eq.s32.totalorder %s21, 3
    %p186 = scmp.ne.s32.totalorder %s181, %s183
    %p187 = scmp.eq.s32.totalorder %s21, 0
    %p188 = por %p186, %p187
    %p189 = scmp.ne.s32.totalorder %s181, %s183
    %p190 = scmp.eq.s32.totalorder %s26, 3
    %p191 = por %p189, %p190
    %p192 = scmp.ne.s32.totalorder %s183, %s184
    %p193 = scmp.eq.s32.totalorder %s26, 0
    %p194 = por %p192, %p193
    %p195 = scmp.ne.s32.totalorder %s183, %s184
    %p196 = scmp.eq.s32.totalorder %s27, 3
    %p197 = por %p195, %p196
    %p199 = scmp.ne.s32.totalorder %s184, %s198
    %p200 = scmp.eq.s32.totalorder %s27, 0
    %p201 = por %p199, %p200
    %s203 = sadd.s32 %s202, 1
    %p206 = scmp.eq.s32.totalorder %s21, 3
    %p207 = scmp.ne.s32.totalorder %s202, %s204
    %p208 = scmp.eq.s32.totalorder %s21, 0
    %p209 = por %p207, %p208
    %p210 = scmp.ne.s32.totalorder %s202, %s204
    %p211 = scmp.eq.s32.totalorder %s26, 3
    %p212 = por %p210, %p211
    %p213 = scmp.ne.s32.totalorder %s204, %s205
    %p214 = scmp.eq.s32.totalorder %s26, 0
    %p215 = por %p213, %p214
    %p216 = scmp.ne.s32.totalorder %s204, %s205
    %p217 = scmp.eq.s32.totalorder %s27, 3
    %p218 = por %p216, %p217
    %p220 = scmp.ne.s32.totalorder %s205, %s219
    %p221 = scmp.eq.s32.totalorder %s27, 0
    %p222 = por %p220, %p221
    %s224 = sadd.s32 %s223, 1
    %p227 = scmp.eq.s32.totalorder %s21, 3
    %p228 = scmp.ne.s32.totalorder %s223, %s225
    %p229 = scmp.eq.s32.totalorder %s21, 0
    %p230 = por %p228, %p229
    %p231 = scmp.ne.s32.totalorder %s223, %s225
    %p232 = scmp.eq.s32.totalorder %s26, 3
    %p233 = por %p231, %p232
    %p234 = scmp.ne.s32.totalorder %s225, %s226
    %p235 = scmp.eq.s32.totalorder %s26, 0
    %p236 = por %p234, %p235
    %p237 = scmp.ne.s32.totalorder %s225, %s226
    %p238 = scmp.eq.s32.totalorder %s27, 3
    %p239 = por %p237, %p238
    %p241 = scmp.ne.s32.totalorder %s226, %s240
    %p242 = scmp.eq.s32.totalorder %s27, 0
    %p243 = por %p241, %p242
    %s245 = sadd.s32 %s244, 1
    %p248 = scmp.eq.s32.totalorder %s21, 3
    %p249 = scmp.ne.s32.totalorder %s244, %s246
    %p250 = scmp.eq.s32.totalorder %s21, 0
    %p251 = por %p249, %p250
    %p252 = scmp.ne.s32.totalorder %s244, %s246
    %p253 = scmp.eq.s32.totalorder %s26, 3
    %p254 = por %p252, %p253
    %p255 = scmp.ne.s32.totalorder %s246, %s247
    %p256 = scmp.eq.s32.totalorder %s26, 0
    %p257 = por %p255, %p256
    %p258 = scmp.ne.s32.totalorder %s246, %s247
    %p259 = scmp.eq.s32.totalorder %s27, 3
    %p260 = por %p258, %p259
    %p262 = scmp.ne.s32.totalorder %s247, %s261
    %p263 = scmp.eq.s32.totalorder %s27, 0
    %p264 = por %p262, %p263
    %s266 = sadd.s32 %s265, 1
    %p269 = scmp.eq.s32.totalorder %s21, 3
    %p270 = scmp.ne.s32.totalorder %s265, %s267
    %p271 = scmp.eq.s32.totalorder %s21, 0
    %p272 = por %p270, %p271
    %p273 = scmp.ne.s32.totalorder %s265, %s267
    %p274 = scmp.eq.s32.totalorder %s26, 3
    %p275 = por %p273, %p274
    %p276 = scmp.ne.s32.totalorder %s267, %s268
    %p277 = scmp.eq.s32.totalorder %s26, 0
    %p278 = por %p276, %p277
    %p279 = scmp.ne.s32.totalorder %s267, %s268
    %p280 = scmp.eq.s32.totalorder %s27, 3
    %p281 = por %p279, %p280
    %p283 = scmp.ne.s32.totalorder %s268, %s282
    %p284 = scmp.eq.s32.totalorder %s27, 0
    %p285 = por %p283, %p284
    %s287 = sadd.s32 %s286, 1
    %p290 = scmp.eq.s32.totalorder %s21, 3
    %p291 = scmp.ne.s32.totalorder %s286, %s288
    %p292 = scmp.eq.s32.totalorder %s21, 0
    %p293 = por %p291, %p292
    %p294 = scmp.ne.s32.totalorder %s286, %s288
    %p295 = scmp.eq.s32.totalorder %s26, 3
    %p296 = por %p294, %p295
    %p297 = scmp.ne.s32.totalorder %s288, %s289
    %p298 = scmp.eq.s32.totalorder %s26, 0
    %p299 = por %p297, %p298
    %p300 = scmp.ne.s32.totalorder %s288, %s289
    %p301 = scmp.eq.s32.totalorder %s27, 3
    %p302 = por %p300, %p301
    %p304 = scmp.ne.s32.totalorder %s289, %s303
    %p305 = scmp.eq.s32.totalorder %s27, 0
    %p306 = por %p304, %p305
    %s307 = ssub.s32 %s21, %s28
    %p308 = scmp.eq.s32.totalorder %s307, 0
    %s310 = sadd.s32 %s309, 1
    %s311 = scalar_select %p308, %s309, %s310
    %p314 = pneg %p308
    %p315 = scmp.eq.s32.totalorder %s21, 3
    %p316 = por %p314, %p315
    %p317 = scmp.ne.s32.totalorder %s309, %s312
    %p318 = scmp.eq.s32.totalorder %s21, 0
    %p319 = por %p317, %p318
    %p320 = scmp.ne.s32.totalorder %s309, %s312
    %p321 = scmp.eq.s32.totalorder %s26, 3
    %p322 = por %p320, %p321
    %p323 = scmp.ne.s32.totalorder %s312, %s313
    %p324 = scmp.eq.s32.totalorder %s26, 0
    %p325 = por %p323, %p324
    %p326 = scmp.ne.s32.totalorder %s312, %s313
    %p327 = scmp.eq.s32.totalorder %s27, 3
    %p328 = por %p326, %p327
    %p330 = scmp.ne.s32.totalorder %s313, %s329
    %p331 = scmp.eq.s32.totalorder %s27, 0
    %p332 = por %p330, %p331
    %s333 = ssub.s32 %s21, %s28
    %p334 = scmp.eq.s32.totalorder %s333, 0
    %s336 = sadd.s32 %s335, 1
    %s337 = scalar_select %p334, %s335, %s336
    %p340 = pneg %p334
    %p341 = scmp.eq.s32.totalorder %s21, 3
    %p342 = por %p340, %p341
    %p343 = scmp.ne.s32.totalorder %s335, %s338
    %p344 = scmp.eq.s32.totalorder %s21, 0
    %p345 = por %p343, %p344
    %p346 = scmp.ne.s32.totalorder %s335, %s338
    %p347 = scmp.eq.s32.totalorder %s26, 3
    %p348 = por %p346, %p347
    %p349 = scmp.ne.s32.totalorder %s338, %s339
    %p350 = scmp.eq.s32.totalorder %s26, 0
    %p351 = por %p349, %p350
    %p352 = scmp.ne.s32.totalorder %s338, %s339
    %p353 = scmp.eq.s32.totalorder %s27, 3
    %p354 = por %p352, %p353
    %p356 = scmp.ne.s32.totalorder %s339, %s355
    %p357 = scmp.eq.s32.totalorder %s27, 0
    %p358 = por %p356, %p357
    %p359 = scmp.le.s32.totalorder 1, %s21
    %p360 = scmp.lt.s32.totalorder %s21, 5
    %p361 = pnand %p359, %p360
    %p362 = pneg %p361
    // Predicated region
    $region9: #{lw_ae_forward.1} parent=5 // pred_check
      _
    $region10: #{lw_ae_forward.1} parent=5 // pred_check_branch
      %364 = sbr.rel (%p361) target = $region12
    $region11: #{lw_ae_forward.1} parent=5 // pred_region
      %s365 = ssub.s32 %s21, 1
      // Predicated region
      $region13: #{lw_ae_forward.1} parent=11 // pred_check
        %p366 = pneg %p68
      $region14: #{lw_ae_forward.1} parent=11 // pred_check_branch
        %368 = sbr.rel (%p366) target = $region16
      $region15: #{lw_ae_forward.1} parent=11 // pred_region
        _
      $region16: #{lw_ae_forward.1} parent=11 // pred_fallthru
        _
      // Predicated region
      $region17: #{lw_ae_forward.1} parent=11 // pred_check
        %p369 = pneg %p89
      $region18: #{lw_ae_forward.1} parent=11 // pred_check_branch
        %371 = sbr.rel (%p369) target = $region20
      $region19: #{lw_ae_forward.1} parent=11 // pred_region
        _
      $region20: #{lw_ae_forward.1} parent=11 // pred_fallthru
        _
      // Predicated region
      $region21: #{lw_ae_forward.1} parent=11 // pred_check
        %p372 = pneg %p110
      $region22: #{lw_ae_forward.1} parent=11 // pred_check_branch
        %374 = sbr.rel (%p372) target = $region24
      $region23: #{lw_ae_forward.1} parent=11 // pred_region
        _
      $region24: #{lw_ae_forward.1} parent=11 // pred_fallthru
        _
      // Predicated region
      $region25: #{lw_ae_forward.1} parent=11 // pred_check
        %p375 = pneg %p131
      $region26: #{lw_ae_forward.1} parent=11 // pred_check_branch
        %377 = sbr.rel (%p375) target = $region28
      $region27: #{lw_ae_forward.1} parent=11 // pred_region
        _
      $region28: #{lw_ae_forward.1} parent=11 // pred_fallthru
        _
      // Predicated region
      $region29: #{lw_ae_forward.1} parent=11 // pred_check
        %p378 = pneg %p152
      $region30: #{lw_ae_forward.1} parent=11 // pred_check_branch
        %380 = sbr.rel (%p378) target = $region32
      $region31: #{lw_ae_forward.1} parent=11 // pred_region
        _
      $region32: #{lw_ae_forward.1} parent=11 // pred_fallthru
        _
      // Predicated region
      $region33: #{lw_ae_forward.1} parent=11 // pred_check
        %p381 = pneg %p173
      $region34: #{lw_ae_forward.1} parent=11 // pred_check_branch
        %383 = sbr.rel (%p381) target = $region36
      $region35: #{lw_ae_forward.1} parent=11 // pred_region
        _
      $region36: #{lw_ae_forward.1} parent=11 // pred_fallthru
        _
      // Predicated region
      $region37: #{lw_ae_forward.1} parent=11 // pred_check
        %p384 = pneg %p194
      $region38: #{lw_ae_forward.1} parent=11 // pred_check_branch
        %386 = sbr.rel (%p384) target = $region40
      $region39: #{lw_ae_forward.1} parent=11 // pred_region
        _
      $region40: #{lw_ae_forward.1} parent=11 // pred_fallthru
        _
      // Predicated region
      $region41: #{lw_ae_forward.1} parent=11 // pred_check
        %p387 = pneg %p215
      $region42: #{lw_ae_forward.1} parent=11 // pred_check_branch
        %389 = sbr.rel (%p387) target = $region44
      $region43: #{lw_ae_forward.1} parent=11 // pred_region
        _
      $region44: #{lw_ae_forward.1} parent=11 // pred_fallthru
        _
      // Predicated region
      $region45: #{lw_ae_forward.1} parent=11 // pred_check
        %p390 = pneg %p236
      $region46: #{lw_ae_forward.1} parent=11 // pred_check_branch
        %392 = sbr.rel (%p390) target = $region48
      $region47: #{lw_ae_forward.1} parent=11 // pred_region
        _
      $region48: #{lw_ae_forward.1} parent=11 // pred_fallthru
        _
      // Predicated region
      $region49: #{lw_ae_forward.1} parent=11 // pred_check
        %p393 = pneg %p257
      $region50: #{lw_ae_forward.1} parent=11 // pred_check_branch
        %395 = sbr.rel (%p393) target = $region52
      $region51: #{lw_ae_forward.1} parent=11 // pred_region
        _
      $region52: #{lw_ae_forward.1} parent=11 // pred_fallthru
        _
      // Predicated region
      $region53: #{lw_ae_forward.1} parent=11 // pred_check
        %p396 = pneg %p278
      $region54: #{lw_ae_forward.1} parent=11 // pred_check_branch
        %398 = sbr.rel (%p396) target = $region56
      $region55: #{lw_ae_forward.1} parent=11 // pred_region
        _
      $region56: #{lw_ae_forward.1} parent=11 // pred_fallthru
        _
      // Predicated region
      $region57: #{lw_ae_forward.1} parent=11 // pred_check
        %p399 = pneg %p299
      $region58: #{lw_ae_forward.1} parent=11 // pred_check_branch
        %401 = sbr.rel (%p399) target = $region60
      $region59: #{lw_ae_forward.1} parent=11 // pred_region
        _
      $region60: #{lw_ae_forward.1} parent=11 // pred_fallthru
        _
    $region12: #{lw_ae_forward.1} parent=5 // pred_fallthru
      _
    %p402 = scmp.lt.s32.totalorder %s21, 4
    // Predicated region
    $region61: #{lw_ae_forward.1} parent=5 // pred_check
      %p403 = pneg %p402
    $region62: #{lw_ae_forward.1} parent=5 // pred_check_branch
      %405 = sbr.rel (%p403) target = $region64
    $region63: #{lw_ae_forward.1} parent=5 // pred_region
      // Predicated region
      $region65: #{lw_ae_forward.1} parent=63 // pred_check
        %p406 = pneg %p41
      $region66: #{lw_ae_forward.1} parent=63 // pred_check_branch
        %408 = sbr.rel (%p406) target = $region68
      $region67: #{lw_ae_forward.1} parent=63 // pred_region
        %p409 = scmp.lt.s32.totalorder %s21, 3
        %s410 = scalar_select %p409, %s21, 3
        %s411 = smul.addr %s410, 4
        %s412 = scalar_lea.vmem %s0, %s411
      $region68: #{lw_ae_forward.1} parent=63 // pred_fallthru
        _
    $region64: #{lw_ae_forward.1} parent=5 // pred_fallthru
      _
    %p413 = scmp.le.s32.totalorder 1, %s21
    %p414 = scmp.lt.s32.totalorder %s21, 5
    %p415 = pnand %p413, %p414
    %p416 = pneg %p415
    // Predicated region
    $region69: #{lw_ae_forward.1} parent=5 // pred_check
      _
    $region70: #{lw_ae_forward.1} parent=5 // pred_check_branch
      %418 = sbr.rel (%p415) target = $region72
    $region71: #{lw_ae_forward.1} parent=5 // pred_region
      %s419 = ssub.s32 %s21, 1
      %p420 = scmp.lt.s32.totalorder %s26, 3
      %s421 = scalar_select %p420, %s26, 3
      %s422 = smul.addr %s421, 4
      %s423 = scalar_lea.vmem %s0, %s422
      %p424 = pneg %p47
      %p425 = pneg %p44
      %p426 = pneg %p68
      %p427 = pneg %p65
      %p428 = pneg %p89
      %p429 = pneg %p86
      %p430 = pneg %p110
      %p431 = pneg %p107
      %p432 = pneg %p131
      %p433 = pneg %p128
      %p434 = pneg %p152
      %p435 = pneg %p149
      %p436 = pneg %p173
      %p437 = pneg %p170
      %p438 = pneg %p194
      %p439 = pneg %p191
      %p440 = pneg %p215
      %p441 = pneg %p212
      %p442 = pneg %p236
      %p443 = pneg %p233
      %p444 = pneg %p257
      %p445 = pneg %p254
      %p446 = pneg %p278
      %p447 = pneg %p275
      %p448 = pneg %p299
      %p449 = pneg %p296
      %p450 = pneg %p325
      %p451 = pneg %p322
      %p452 = scmp.lt.s32.totalorder %s26, 3
      %s453 = scalar_select %p452, %s26, 3
      %s454 = smul.addr %s453, 8
      %s455 = scalar_lea.vmem %s13, %s454
      %p456 = pneg %p351
      %p457 = pneg %p348
      %p458 = scmp.lt.s32.totalorder %s26, 3
      %s459 = scalar_select %p458, %s26, 3
      %s460 = smul.addr %s459, 8
      %s461 = scalar_lea.vmem %s14, %s460
      %p462 = scmp.lt.s32.totalorder %s26, 3
      %s463 = scalar_select %p462, %s26, 3
      %s464 = smul.addr %s463, 4
      %s465 = scalar_lea.vmem %s0, %s464
      %p466 = scmp.lt.s32.totalorder %s26, 3
      %s467 = scalar_select %p466, %s26, 3
      %s468 = smul.addr %s467, 8
      %s469 = scalar_lea.vmem %s13, %s468
      %p470 = scmp.lt.s32.totalorder %s26, 3
      %s471 = scalar_select %p470, %s26, 3
      %s472 = smul.addr %s471, 8
      %s473 = scalar_lea.vmem %s14, %s472
      %v475 = vld [vmem:[%s465] sm:$0xf]
      %v476 = vld [vmem:[%s1] sm:$0xf]
      %v477 = vld [vmem:[%s1 + $0x4] sm:$0xf]
      %v478 = vld [vmem:[%s1 + $0x8] sm:$0xf]
      %v479 = vld [vmem:[%s1 + $0xc] sm:$0xf]
      %v480 = vld [vmem:[%s1 + $0x10] sm:$0xf]
      %v481 = vld [vmem:[%s1 + $0x14] sm:$0xf]
      %v482 = vld [vmem:[%s1 + $0x18] sm:$0xf]
      %v483 = vld [vmem:[%s1 + $0x1c] sm:$0xf]
      %v484 = vld [vmem:[%s1 + $0x20] sm:$0xf]
      %v485 = vld [vmem:[%s1 + $0x24] sm:$0xf]
      %v486 = vld [vmem:[%s1 + $0x28] sm:$0xf]
      %v487 = vld [vmem:[%s1 + $0x2c] sm:$0xf]
      %v488 = vld [vmem:[%s1 + $0x30] sm:$0xf]
      %v489 = vld [vmem:[%s1 + $0x34] sm:$0xf]
      %v490 = vld [vmem:[%s1 + $0x38] sm:$0xf]
      %v491 = vld [vmem:[%s1 + $0x3c] sm:$0xf]
      %v492 = vld [vmem:[%s2] sm:$0x1]
      %v494 = vlaneseq
      %v495 = vshrl.u32 %v494, 7
      %v496 = vsub.s32 0, %v495
      %v497 = vrot.slane %v492, %v496
      %v515 = vunpack.c.l.b16 %v476
      %v516 = vunpack.c.l.b16 %v477
      %v517 = vunpack.c.l.b16 %v478
      %v518 = vunpack.c.l.b16 %v479
      %v519 = vunpack.c.l.b16 %v480
      %v520 = vunpack.c.l.b16 %v481
      %v521 = vunpack.c.l.b16 %v482
      %v522 = vunpack.c.l.b16 %v483
      %v523 = vunpack.c.l.b16 %v484
      %v524 = vunpack.c.l.b16 %v485
      %v525 = vunpack.c.l.b16 %v486
      %v526 = vunpack.c.l.b16 %v487
      %v527 = vunpack.c.l.b16 %v488
      %v528 = vunpack.c.l.b16 %v489
      %v529 = vunpack.c.l.b16 %v490
      %v530 = vunpack.c.l.b16 %v491
      %v531 = vpack.c.b16 %v516, %v515
      %v532 = vpack.c.b16 %v518, %v517
      %v533 = vpack.c.b16 %v520, %v519
      %v534 = vpack.c.b16 %v522, %v521
      %v535 = vpack.c.b16 %v524, %v523
      %v536 = vpack.c.b16 %v526, %v525
      %v537 = vpack.c.b16 %v528, %v527
      %v538 = vpack.c.b16 %v530, %v529
      %547 = vmatprep.subr.bf16.mxu0 0
      %548 = vmatpush1.bf16.msra.mxu0 %v538
      %549 = vmatprep.subr.bf16.mxu0 0
      %550 = vmatpush1.bf16.msra.mxu0 %v537
      %551 = vmatprep.subr.bf16.mxu0 0
      %552 = vmatpush1.bf16.msra.mxu0 %v536
      %553 = vmatprep.subr.bf16.mxu0 0
      %554 = vmatpush1.bf16.msra.mxu0 %v535
      %555 = vmatprep.subr.bf16.mxu0 0
      %556 = vmatpush1.bf16.msra.mxu0 %v534
      %557 = vmatprep.subr.bf16.mxu0 0
      %558 = vmatpush1.bf16.msra.mxu0 %v533
      %559 = vmatprep.subr.bf16.mxu0 0
      %560 = vmatpush1.bf16.msra.mxu0 %v532
      %561 = vmatprep.subr.bf16.mxu0 0
      %562 = vmatpush1.bf16.msra.mxu0 %v531
      %563 = vmatprep.subr.bf16.mxu0 0
      %564 = vmatpush2.bf16.msra.mxu0 0
      %565 = vmatprep.subr.bf16.mxu0 0
      %566 = vmatpush2.bf16.msra.mxu0 0
      %567 = vmatprep.subr.bf16.mxu0 0
      %568 = vmatpush2.bf16.msra.mxu0 0
      %569 = vmatprep.subr.bf16.mxu0 0
      %570 = vmatpush2.bf16.msra.mxu0 0
      %571 = vmatprep.subr.bf16.mxu0 0
      %572 = vmatpush2.bf16.msra.mxu0 0
      %573 = vmatprep.subr.bf16.mxu0 0
      %574 = vmatpush2.bf16.msra.mxu0 0
      %575 = vmatprep.subr.bf16.mxu0 0
      %576 = vmatpush2.bf16.msra.mxu0 0
      %577 = vmatprep.subr.bf16.mxu0 0
      %578 = vmatpush2.bf16.msra.mxu0 0
      %579 = vmatprep.mubr.bf16.mxu0 0
      %580 = vmatmul.mubr.bf16.gmra.mxu0 %v475
      %v581 = vpop.f32.mrf.mxu0
      %v582 = vadd.f32 %v497, %v581
      %v583 = vpop.f32.mrf.mxu0
      %v584 = vpop.f32.mrf.mxu0
      %v585 = vpop.f32.mrf.mxu0
      %586 = vdwg.mxu0
      %v587 = vmax.f32 %v582, 0.0
      %v588 = vld [vmem:[%s3] sm:$0xf]
      %v589 = vld [vmem:[%s3 + $0x4] sm:$0xf]
      %v590 = vld [vmem:[%s3 + $0x8] sm:$0xf]
      %v591 = vld [vmem:[%s3 + $0xc] sm:$0xf]
      %v592 = vld [vmem:[%s3 + $0x10] sm:$0xf]
      %v593 = vld [vmem:[%s3 + $0x14] sm:$0xf]
      %v594 = vld [vmem:[%s3 + $0x18] sm:$0xf]
      %v595 = vld [vmem:[%s3 + $0x1c] sm:$0xf]
      %v596 = vld [vmem:[%s3 + $0x20] sm:$0xf]
      %v597 = vld [vmem:[%s3 + $0x24] sm:$0xf]
      %v598 = vld [vmem:[%s3 + $0x28] sm:$0xf]
      %v599 = vld [vmem:[%s3 + $0x2c] sm:$0xf]
      %v600 = vld [vmem:[%s3 + $0x30] sm:$0xf]
      %v601 = vld [vmem:[%s3 + $0x34] sm:$0xf]
      %v602 = vld [vmem:[%s3 + $0x38] sm:$0xf]
      %v603 = vld [vmem:[%s3 + $0x3c] sm:$0xf]
      %v604 = vpack.c.bf16 %v587, %v587
      %v605 = vld [vmem:[%s4] sm:$0x1]
      %v607 = vlaneseq
      %v608 = vshrl.u32 %v607, 7
      %v609 = vsub.s32 0, %v608
      %v610 = vrot.slane %v605, %v609
      %v628 = vunpack.c.l.b16 %v588
      %v629 = vunpack.c.l.b16 %v589
      %v630 = vunpack.c.l.b16 %v590
      %v631 = vunpack.c.l.b16 %v591
      %v632 = vunpack.c.l.b16 %v592
      %v633 = vunpack.c.l.b16 %v593
      %v634 = vunpack.c.l.b16 %v594
      %v635 = vunpack.c.l.b16 %v595
      %v636 = vunpack.c.l.b16 %v596
      %v637 = vunpack.c.l.b16 %v597
      %v638 = vunpack.c.l.b16 %v598
      %v639 = vunpack.c.l.b16 %v599
      %v640 = vunpack.c.l.b16 %v600
      %v641 = vunpack.c.l.b16 %v601
      %v642 = vunpack.c.l.b16 %v602
      %v643 = vunpack.c.l.b16 %v603
      %v644 = vpack.c.b16 %v629, %v628
      %v645 = vpack.c.b16 %v631, %v630
      %v646 = vpack.c.b16 %v633, %v632
      %v647 = vpack.c.b16 %v635, %v634
      %v648 = vpack.c.b16 %v637, %v636
      %v649 = vpack.c.b16 %v639, %v638
      %v650 = vpack.c.b16 %v641, %v640
      %v651 = vpack.c.b16 %v643, %v642
      %660 = vmatprep.subr.bf16.mxu0 0
      %661 = vmatpush1.bf16.msra.mxu0 %v651
      %662 = vmatprep.subr.bf16.mxu0 0
      %663 = vmatpush1.bf16.msra.mxu0 %v650
      %664 = vmatprep.subr.bf16.mxu0 0
      %665 = vmatpush1.bf16.msra.mxu0 %v649
      %666 = vmatprep.subr.bf16.mxu0 0
      %667 = vmatpush1.bf16.msra.mxu0 %v648
      %668 = vmatprep.subr.bf16.mxu0 0
      %669 = vmatpush1.bf16.msra.mxu0 %v647
      %670 = vmatprep.subr.bf16.mxu0 0
      %671 = vmatpush1.bf16.msra.mxu0 %v646
      %672 = vmatprep.subr.bf16.mxu0 0
      %673 = vmatpush1.bf16.msra.mxu0 %v645
      %674 = vmatprep.subr.bf16.mxu0 0
      %675 = vmatpush1.bf16.msra.mxu0 %v644
      %676 = vmatprep.subr.bf16.mxu0 0
      %677 = vmatpush2.bf16.msra.mxu0 0
      %678 = vmatprep.subr.bf16.mxu0 0
      %679 = vmatpush2.bf16.msra.mxu0 0
      %680 = vmatprep.subr.bf16.mxu0 0
      %681 = vmatpush2.bf16.msra.mxu0 0
      %682 = vmatprep.subr.bf16.mxu0 0
      %683 = vmatpush2.bf16.msra.mxu0 0
      %684 = vmatprep.subr.bf16.mxu0 0
      %685 = vmatpush2.bf16.msra.mxu0 0
      %686 = vmatprep.subr.bf16.mxu0 0
      %687 = vmatpush2.bf16.msra.mxu0 0
      %688 = vmatprep.subr.bf16.mxu0 0
      %689 = vmatpush2.bf16.msra.mxu0 0
      %690 = vmatprep.subr.bf16.mxu0 0
      %691 = vmatpush2.bf16.msra.mxu0 0
      %692 = vmatprep.mubr.bf16.mxu0 0
      %693 = vmatmul.mubr.bf16.gmra.mxu0 %v604
      %v694 = vpop.f32.mrf.mxu0
      %v695 = vadd.f32 %v610, %v694
      %v696 = vpop.f32.mrf.mxu0
      %v697 = vpop.f32.mrf.mxu0
      %v698 = vpop.f32.mrf.mxu0
      %699 = vdwg.mxu0
      %v700 = vmax.f32 %v695, 0.0
      %v701 = vld [vmem:[%s5] sm:$0xf]
      %v702 = vld [vmem:[%s5 + $0x4] sm:$0xf]
      %v703 = vld [vmem:[%s5 + $0x8] sm:$0xf]
      %v704 = vld [vmem:[%s5 + $0xc] sm:$0xf]
      %v705 = vld [vmem:[%s5 + $0x10] sm:$0xf]
      %v706 = vld [vmem:[%s5 + $0x14] sm:$0xf]
      %v707 = vld [vmem:[%s5 + $0x18] sm:$0xf]
      %v708 = vld [vmem:[%s5 + $0x1c] sm:$0xf]
      %v709 = vld [vmem:[%s5 + $0x20] sm:$0xf]
      %v710 = vld [vmem:[%s5 + $0x24] sm:$0xf]
      %v711 = vld [vmem:[%s5 + $0x28] sm:$0xf]
      %v712 = vld [vmem:[%s5 + $0x2c] sm:$0xf]
      %v713 = vld [vmem:[%s5 + $0x30] sm:$0xf]
      %v714 = vld [vmem:[%s5 + $0x34] sm:$0xf]
      %v715 = vld [vmem:[%s5 + $0x38] sm:$0xf]
      %v716 = vld [vmem:[%s5 + $0x3c] sm:$0xf]
      %v717 = vpack.c.bf16 %v700, %v700
      %v718 = vld [vmem:[%s6] sm:$0x1]
      %v720 = vlaneseq
      %v721 = vshrl.u32 %v720, 7
      %v722 = vsub.s32 0, %v721
      %v723 = vrot.slane %v718, %v722
      %v741 = vunpack.c.l.b16 %v701
      %v742 = vunpack.c.l.b16 %v702
      %v743 = vunpack.c.l.b16 %v703
      %v744 = vunpack.c.l.b16 %v704
      %v745 = vunpack.c.l.b16 %v705
      %v746 = vunpack.c.l.b16 %v706
      %v747 = vunpack.c.l.b16 %v707
      %v748 = vunpack.c.l.b16 %v708
      %v749 = vunpack.c.l.b16 %v709
      %v750 = vunpack.c.l.b16 %v710
      %v751 = vunpack.c.l.b16 %v711
      %v752 = vunpack.c.l.b16 %v712
      %v753 = vunpack.c.l.b16 %v713
      %v754 = vunpack.c.l.b16 %v714
      %v755 = vunpack.c.l.b16 %v715
      %v756 = vunpack.c.l.b16 %v716
      %v757 = vpack.c.b16 %v742, %v741
      %v758 = vpack.c.b16 %v744, %v743
      %v759 = vpack.c.b16 %v746, %v745
      %v760 = vpack.c.b16 %v748, %v747
      %v761 = vpack.c.b16 %v750, %v749
      %v762 = vpack.c.b16 %v752, %v751
      %v763 = vpack.c.b16 %v754, %v753
      %v764 = vpack.c.b16 %v756, %v755
      %773 = vmatprep.subr.bf16.mxu0 0
      %774 = vmatpush1.bf16.msra.mxu0 %v764
      %775 = vmatprep.subr.bf16.mxu0 0
      %776 = vmatpush1.bf16.msra.mxu0 %v763
      %777 = vmatprep.subr.bf16.mxu0 0
      %778 = vmatpush1.bf16.msra.mxu0 %v762
      %779 = vmatprep.subr.bf16.mxu0 0
      %780 = vmatpush1.bf16.msra.mxu0 %v761
      %781 = vmatprep.subr.bf16.mxu0 0
      %782 = vmatpush1.bf16.msra.mxu0 %v760
      %783 = vmatprep.subr.bf16.mxu0 0
      %784 = vmatpush1.bf16.msra.mxu0 %v759
      %785 = vmatprep.subr.bf16.mxu0 0
      %786 = vmatpush1.bf16.msra.mxu0 %v758
      %787 = vmatprep.subr.bf16.mxu0 0
      %788 = vmatpush1.bf16.msra.mxu0 %v757
      %789 = vmatprep.subr.bf16.mxu0 0
      %790 = vmatpush2.bf16.msra.mxu0 0
      %791 = vmatprep.subr.bf16.mxu0 0
      %792 = vmatpush2.bf16.msra.mxu0 0
      %793 = vmatprep.subr.bf16.mxu0 0
      %794 = vmatpush2.bf16.msra.mxu0 0
      %795 = vmatprep.subr.bf16.mxu0 0
      %796 = vmatpush2.bf16.msra.mxu0 0
      %797 = vmatprep.subr.bf16.mxu0 0
      %798 = vmatpush2.bf16.msra.mxu0 0
      %799 = vmatprep.subr.bf16.mxu0 0
      %800 = vmatpush2.bf16.msra.mxu0 0
      %801 = vmatprep.subr.bf16.mxu0 0
      %802 = vmatpush2.bf16.msra.mxu0 0
      %803 = vmatprep.subr.bf16.mxu0 0
      %804 = vmatpush2.bf16.msra.mxu0 0
      %805 = vmatprep.mubr.bf16.mxu0 0
      %806 = vmatmul.mubr.bf16.gmra.mxu0 %v717
      %v807 = vpop.f32.mrf.mxu0
      %v808 = vadd.f32 %v723, %v807
      %v809 = vpop.f32.mrf.mxu0
      %v810 = vpop.f32.mrf.mxu0
      %v811 = vpop.f32.mrf.mxu0
      %812 = vdwg.mxu0
      %813 = vst [vmem:[%s469] sm:$0xff] %v808
      %v814 = vld [vmem:[%s7] sm:$0xf]
      %v815 = vld [vmem:[%s7 + $0x4] sm:$0xf]
      %v816 = vld [vmem:[%s7 + $0x8] sm:$0xf]
      %v817 = vld [vmem:[%s7 + $0xc] sm:$0xf]
      %v818 = vld [vmem:[%s7 + $0x10] sm:$0xf]
      %v819 = vld [vmem:[%s7 + $0x14] sm:$0xf]
      %v820 = vld [vmem:[%s7 + $0x18] sm:$0xf]
      %v821 = vld [vmem:[%s7 + $0x1c] sm:$0xf]
      %v822 = vld [vmem:[%s7 + $0x20] sm:$0xf]
      %v823 = vld [vmem:[%s7 + $0x24] sm:$0xf]
      %v824 = vld [vmem:[%s7 + $0x28] sm:$0xf]
      %v825 = vld [vmem:[%s7 + $0x2c] sm:$0xf]
      %v826 = vld [vmem:[%s7 + $0x30] sm:$0xf]
      %v827 = vld [vmem:[%s7 + $0x34] sm:$0xf]
      %v828 = vld [vmem:[%s7 + $0x38] sm:$0xf]
      %v829 = vld [vmem:[%s7 + $0x3c] sm:$0xf]
      %v830 = vpack.c.bf16 %v808, %v808
      %v831 = vld [vmem:[%s8] sm:$0x1]
      %v833 = vlaneseq
      %v834 = vshrl.u32 %v833, 7
      %v835 = vsub.s32 0, %v834
      %v836 = vrot.slane %v831, %v835
      %v854 = vunpack.c.l.b16 %v814
      %v855 = vunpack.c.l.b16 %v815
      %v856 = vunpack.c.l.b16 %v816
      %v857 = vunpack.c.l.b16 %v817
      %v858 = vunpack.c.l.b16 %v818
      %v859 = vunpack.c.l.b16 %v819
      %v860 = vunpack.c.l.b16 %v820
      %v861 = vunpack.c.l.b16 %v821
      %v862 = vunpack.c.l.b16 %v822
      %v863 = vunpack.c.l.b16 %v823
      %v864 = vunpack.c.l.b16 %v824
      %v865 = vunpack.c.l.b16 %v825
      %v866 = vunpack.c.l.b16 %v826
      %v867 = vunpack.c.l.b16 %v827
      %v868 = vunpack.c.l.b16 %v828
      %v869 = vunpack.c.l.b16 %v829
      %v870 = vpack.c.b16 %v855, %v854
      %v871 = vpack.c.b16 %v857, %v856
      %v872 = vpack.c.b16 %v859, %v858
      %v873 = vpack.c.b16 %v861, %v860
      %v874 = vpack.c.b16 %v863, %v862
      %v875 = vpack.c.b16 %v865, %v864
      %v876 = vpack.c.b16 %v867, %v866
      %v877 = vpack.c.b16 %v869, %v868
      %886 = vmatprep.subr.bf16.mxu0 0
      %887 = vmatpush1.bf16.msra.mxu0 %v877
      %888 = vmatprep.subr.bf16.mxu0 0
      %889 = vmatpush1.bf16.msra.mxu0 %v876
      %890 = vmatprep.subr.bf16.mxu0 0
      %891 = vmatpush1.bf16.msra.mxu0 %v875
      %892 = vmatprep.subr.bf16.mxu0 0
      %893 = vmatpush1.bf16.msra.mxu0 %v874
      %894 = vmatprep.subr.bf16.mxu0 0
      %895 = vmatpush1.bf16.msra.mxu0 %v873
      %896 = vmatprep.subr.bf16.mxu0 0
      %897 = vmatpush1.bf16.msra.mxu0 %v872
      %898 = vmatprep.subr.bf16.mxu0 0
      %899 = vmatpush1.bf16.msra.mxu0 %v871
      %900 = vmatprep.subr.bf16.mxu0 0
      %901 = vmatpush1.bf16.msra.mxu0 %v870
      %902 = vmatprep.subr.bf16.mxu0 0
      %903 = vmatpush2.bf16.msra.mxu0 0
      %904 = vmatprep.subr.bf16.mxu0 0
      %905 = vmatpush2.bf16.msra.mxu0 0
      %906 = vmatprep.subr.bf16.mxu0 0
      %907 = vmatpush2.bf16.msra.mxu0 0
      %908 = vmatprep.subr.bf16.mxu0 0
      %909 = vmatpush2.bf16.msra.mxu0 0
      %910 = vmatprep.subr.bf16.mxu0 0
      %911 = vmatpush2.bf16.msra.mxu0 0
      %912 = vmatprep.subr.bf16.mxu0 0
      %913 = vmatpush2.bf16.msra.mxu0 0
      %914 = vmatprep.subr.bf16.mxu0 0
      %915 = vmatpush2.bf16.msra.mxu0 0
      %916 = vmatprep.subr.bf16.mxu0 0
      %917 = vmatpush2.bf16.msra.mxu0 0
      %918 = vmatprep.mubr.bf16.mxu0 0
      %919 = vmatmul.mubr.bf16.gmra.mxu0 %v830
      %v920 = vpop.f32.mrf.mxu0
      %v921 = vadd.f32 %v836, %v920
      %v922 = vpop.f32.mrf.mxu0
      %v923 = vpop.f32.mrf.mxu0
      %v924 = vpop.f32.mrf.mxu0
      %925 = vdwg.mxu0
      %v926 = vmax.f32 %v921, 0.0
      %v927 = vld [vmem:[%s9] sm:$0xf]
      %v928 = vld [vmem:[%s9 + $0x4] sm:$0xf]
      %v929 = vld [vmem:[%s9 + $0x8] sm:$0xf]
      %v930 = vld [vmem:[%s9 + $0xc] sm:$0xf]
      %v931 = vld [vmem:[%s9 + $0x10] sm:$0xf]
      %v932 = vld [vmem:[%s9 + $0x14] sm:$0xf]
      %v933 = vld [vmem:[%s9 + $0x18] sm:$0xf]
      %v934 = vld [vmem:[%s9 + $0x1c] sm:$0xf]
      %v935 = vld [vmem:[%s9 + $0x20] sm:$0xf]
      %v936 = vld [vmem:[%s9 + $0x24] sm:$0xf]
      %v937 = vld [vmem:[%s9 + $0x28] sm:$0xf]
      %v938 = vld [vmem:[%s9 + $0x2c] sm:$0xf]
      %v939 = vld [vmem:[%s9 + $0x30] sm:$0xf]
      %v940 = vld [vmem:[%s9 + $0x34] sm:$0xf]
      %v941 = vld [vmem:[%s9 + $0x38] sm:$0xf]
      %v942 = vld [vmem:[%s9 + $0x3c] sm:$0xf]
      %v943 = vpack.c.bf16 %v926, %v926
      %v944 = vld [vmem:[%s10] sm:$0x1]
      %v946 = vlaneseq
      %v947 = vshrl.u32 %v946, 7
      %v948 = vsub.s32 0, %v947
      %v949 = vrot.slane %v944, %v948
      %v967 = vunpack.c.l.b16 %v927
      %v968 = vunpack.c.l.b16 %v928
      %v969 = vunpack.c.l.b16 %v929
      %v970 = vunpack.c.l.b16 %v930
      %v971 = vunpack.c.l.b16 %v931
      %v972 = vunpack.c.l.b16 %v932
      %v973 = vunpack.c.l.b16 %v933
      %v974 = vunpack.c.l.b16 %v934
      %v975 = vunpack.c.l.b16 %v935
      %v976 = vunpack.c.l.b16 %v936
      %v977 = vunpack.c.l.b16 %v937
      %v978 = vunpack.c.l.b16 %v938
      %v979 = vunpack.c.l.b16 %v939
      %v980 = vunpack.c.l.b16 %v940
      %v981 = vunpack.c.l.b16 %v941
      %v982 = vunpack.c.l.b16 %v942
      %v983 = vpack.c.b16 %v968, %v967
      %v984 = vpack.c.b16 %v970, %v969
      %v985 = vpack.c.b16 %v972, %v971
      %v986 = vpack.c.b16 %v974, %v973
      %v987 = vpack.c.b16 %v976, %v975
      %v988 = vpack.c.b16 %v978, %v977
      %v989 = vpack.c.b16 %v980, %v979
      %v990 = vpack.c.b16 %v982, %v981
      %999 = vmatprep.subr.bf16.mxu0 0
      %1000 = vmatpush1.bf16.msra.mxu0 %v990
      %1001 = vmatprep.subr.bf16.mxu0 0
      %1002 = vmatpush1.bf16.msra.mxu0 %v989
      %1003 = vmatprep.subr.bf16.mxu0 0
      %1004 = vmatpush1.bf16.msra.mxu0 %v988
      %1005 = vmatprep.subr.bf16.mxu0 0
      %1006 = vmatpush1.bf16.msra.mxu0 %v987
      %1007 = vmatprep.subr.bf16.mxu0 0
      %1008 = vmatpush1.bf16.msra.mxu0 %v986
      %1009 = vmatprep.subr.bf16.mxu0 0
      %1010 = vmatpush1.bf16.msra.mxu0 %v985
      %1011 = vmatprep.subr.bf16.mxu0 0
      %1012 = vmatpush1.bf16.msra.mxu0 %v984
      %1013 = vmatprep.subr.bf16.mxu0 0
      %1014 = vmatpush1.bf16.msra.mxu0 %v983
      %1015 = vmatprep.subr.bf16.mxu0 0
      %1016 = vmatpush2.bf16.msra.mxu0 0
      %1017 = vmatprep.subr.bf16.mxu0 0
      %1018 = vmatpush2.bf16.msra.mxu0 0
      %1019 = vmatprep.subr.bf16.mxu0 0
      %1020 = vmatpush2.bf16.msra.mxu0 0
      %1021 = vmatprep.subr.bf16.mxu0 0
      %1022 = vmatpush2.bf16.msra.mxu0 0
      %1023 = vmatprep.subr.bf16.mxu0 0
      %1024 = vmatpush2.bf16.msra.mxu0 0
      %1025 = vmatprep.subr.bf16.mxu0 0
      %1026 = vmatpush2.bf16.msra.mxu0 0
      %1027 = vmatprep.subr.bf16.mxu0 0
      %1028 = vmatpush2.bf16.msra.mxu0 0
      %1029 = vmatprep.subr.bf16.mxu0 0
      %1030 = vmatpush2.bf16.msra.mxu0 0
      %1031 = vmatprep.mubr.bf16.mxu0 0
      %1032 = vmatmul.mubr.bf16.gmra.mxu0 %v943
      %v1033 = vpop.f32.mrf.mxu0
      %v1034 = vadd.f32 %v949, %v1033
      %v1035 = vpop.f32.mrf.mxu0
      %v1036 = vpop.f32.mrf.mxu0
      %v1037 = vpop.f32.mrf.mxu0
      %1038 = vdwg.mxu0
      %v1039 = vmax.f32 %v1034, 0.0
      %v1040 = vld [vmem:[%s11] sm:$0xf]
      %v1041 = vld [vmem:[%s11 + $0x4] sm:$0xf]
      %v1042 = vld [vmem:[%s11 + $0x8] sm:$0xf]
      %v1043 = vld [vmem:[%s11 + $0xc] sm:$0xf]
      %v1044 = vld [vmem:[%s11 + $0x10] sm:$0xf]
      %v1045 = vld [vmem:[%s11 + $0x14] sm:$0xf]
      %v1046 = vld [vmem:[%s11 + $0x18] sm:$0xf]
      %v1047 = vld [vmem:[%s11 + $0x1c] sm:$0xf]
      %v1048 = vld [vmem:[%s11 + $0x20] sm:$0xf]
      %v1049 = vld [vmem:[%s11 + $0x24] sm:$0xf]
      %v1050 = vld [vmem:[%s11 + $0x28] sm:$0xf]
      %v1051 = vld [vmem:[%s11 + $0x2c] sm:$0xf]
      %v1052 = vld [vmem:[%s11 + $0x30] sm:$0xf]
      %v1053 = vld [vmem:[%s11 + $0x34] sm:$0xf]
      %v1054 = vld [vmem:[%s11 + $0x38] sm:$0xf]
      %v1055 = vld [vmem:[%s11 + $0x3c] sm:$0xf]
      %v1056 = vpack.c.bf16 %v1039, %v1039
      %v1057 = vld [vmem:[%s12] sm:$0x1]
      %v1059 = vlaneseq
      %v1060 = vshrl.u32 %v1059, 7
      %v1061 = vsub.s32 0, %v1060
      %v1062 = vrot.slane %v1057, %v1061
      %v1080 = vunpack.c.l.b16 %v1040
      %v1081 = vunpack.c.l.b16 %v1041
      %v1082 = vunpack.c.l.b16 %v1042
      %v1083 = vunpack.c.l.b16 %v1043
      %v1084 = vunpack.c.l.b16 %v1044
      %v1085 = vunpack.c.l.b16 %v1045
      %v1086 = vunpack.c.l.b16 %v1046
      %v1087 = vunpack.c.l.b16 %v1047
      %v1088 = vunpack.c.l.b16 %v1048
      %v1089 = vunpack.c.l.b16 %v1049
      %v1090 = vunpack.c.l.b16 %v1050
      %v1091 = vunpack.c.l.b16 %v1051
      %v1092 = vunpack.c.l.b16 %v1052
      %v1093 = vunpack.c.l.b16 %v1053
      %v1094 = vunpack.c.l.b16 %v1054
      %v1095 = vunpack.c.l.b16 %v1055
      %v1096 = vpack.c.b16 %v1081, %v1080
      %v1097 = vpack.c.b16 %v1083, %v1082
      %v1098 = vpack.c.b16 %v1085, %v1084
      %v1099 = vpack.c.b16 %v1087, %v1086
      %v1100 = vpack.c.b16 %v1089, %v1088
      %v1101 = vpack.c.b16 %v1091, %v1090
      %v1102 = vpack.c.b16 %v1093, %v1092
      %v1103 = vpack.c.b16 %v1095, %v1094
      %1112 = vmatprep.subr.bf16.mxu0 0
      %1113 = vmatpush1.bf16.msra.mxu0 %v1103
      %1114 = vmatprep.subr.bf16.mxu0 0
      %1115 = vmatpush1.bf16.msra.mxu0 %v1102
      %1116 = vmatprep.subr.bf16.mxu0 0
      %1117 = vmatpush1.bf16.msra.mxu0 %v1101
      %1118 = vmatprep.subr.bf16.mxu0 0
      %1119 = vmatpush1.bf16.msra.mxu0 %v1100
      %1120 = vmatprep.subr.bf16.mxu0 0
      %1121 = vmatpush1.bf16.msra.mxu0 %v1099
      %1122 = vmatprep.subr.bf16.mxu0 0
      %1123 = vmatpush1.bf16.msra.mxu0 %v1098
      %1124 = vmatprep.subr.bf16.mxu0 0
      %1125 = vmatpush1.bf16.msra.mxu0 %v1097
      %1126 = vmatprep.subr.bf16.mxu0 0
      %1127 = vmatpush1.bf16.msra.mxu0 %v1096
      %1128 = vmatprep.subr.bf16.mxu0 0
      %1129 = vmatpush2.bf16.msra.mxu0 0
      %1130 = vmatprep.subr.bf16.mxu0 0
      %1131 = vmatpush2.bf16.msra.mxu0 0
      %1132 = vmatprep.subr.bf16.mxu0 0
      %1133 = vmatpush2.bf16.msra.mxu0 0
      %1134 = vmatprep.subr.bf16.mxu0 0
      %1135 = vmatpush2.bf16.msra.mxu0 0
      %1136 = vmatprep.subr.bf16.mxu0 0
      %1137 = vmatpush2.bf16.msra.mxu0 0
      %1138 = vmatprep.subr.bf16.mxu0 0
      %1139 = vmatpush2.bf16.msra.mxu0 0
      %1140 = vmatprep.subr.bf16.mxu0 0
      %1141 = vmatpush2.bf16.msra.mxu0 0
      %1142 = vmatprep.subr.bf16.mxu0 0
      %1143 = vmatpush2.bf16.msra.mxu0 0
      %1144 = vmatprep.mubr.bf16.mxu0 0
      %1145 = vmatmul.mubr.bf16.gmra.mxu0 %v1056
      %v1146 = vpop.f32.mrf.mxu0
      %v1147 = vadd.f32 %v1062, %v1146
      %v1148 = vpop.f32.mrf.mxu0
      %v1149 = vpop.f32.mrf.mxu0
      %v1150 = vpop.f32.mrf.mxu0
      %1151 = vdwg.mxu0
      %1152 = vst [vmem:[%s473] sm:$0xff] %v1147
      %p1153 = scmp.lt.s32.totalorder %s26, 3
      %s1154 = scalar_select %p1153, %s26, 3
      %s1155 = smul.addr %s1154, 8
      %s1156 = scalar_lea.vmem %s13, %s1155
      %p1157 = scmp.lt.s32.totalorder %s26, 3
      %s1158 = scalar_select %p1157, %s26, 3
      %s1159 = smul.addr %s1158, 8
      %s1160 = scalar_lea.vmem %s14, %s1159
      // Predicated region
      $region73: #{lw_ae_forward.1} parent=71 // pred_check
        %p1161 = pneg %p322
      $region74: #{lw_ae_forward.1} parent=71 // pred_check_branch
        %1163 = sbr.rel (%p1161) target = $region76
      $region75: #{lw_ae_forward.1} parent=71 // pred_region
        _
      $region76: #{lw_ae_forward.1} parent=71 // pred_fallthru
        _
      // Predicated region
      $region77: #{lw_ae_forward.1} parent=71 // pred_check
        %p1164 = pneg %p348
      $region78: #{lw_ae_forward.1} parent=71 // pred_check_branch
        %1166 = sbr.rel (%p1164) target = $region80
      $region79: #{lw_ae_forward.1} parent=71 // pred_region
        _
      $region80: #{lw_ae_forward.1} parent=71 // pred_fallthru
        _
    $region72: #{lw_ae_forward.1} parent=5 // pred_fallthru
      _
    %p1167 = scmp.le.s32.totalorder 2, %s21
    // Predicated region
    $region81: #{lw_ae_forward.1} parent=5 // pred_check
      %p1168 = pneg %p1167
    $region82: #{lw_ae_forward.1} parent=5 // pred_check_branch
      %1170 = sbr.rel (%p1168) target = $region84
    $region83: #{lw_ae_forward.1} parent=5 // pred_region
      %s1171 = ssub.s32 %s21, 2
      // Predicated region
      $region85: #{lw_ae_forward.1} parent=83 // pred_check
        %p1172 = pneg %p328
      $region86: #{lw_ae_forward.1} parent=83 // pred_check_branch
        %1174 = sbr.rel (%p1172) target = $region88
      $region87: #{lw_ae_forward.1} parent=83 // pred_region
        %p1175 = scmp.lt.s32.totalorder %s27, 3
        %s1176 = scalar_select %p1175, %s27, 3
        %s1177 = smul.addr %s1176, 8
        %s1178 = scalar_lea.vmem %s13, %s1177
      $region88: #{lw_ae_forward.1} parent=83 // pred_fallthru
        _
      // Predicated region
      $region89: #{lw_ae_forward.1} parent=83 // pred_check
        %p1179 = pneg %p354
      $region90: #{lw_ae_forward.1} parent=83 // pred_check_branch
        %1181 = sbr.rel (%p1179) target = $region92
      $region91: #{lw_ae_forward.1} parent=83 // pred_region
        %p1182 = scmp.lt.s32.totalorder %s27, 3
        %s1183 = scalar_select %p1182, %s27, 3
        %s1184 = smul.addr %s1183, 8
        %s1185 = scalar_lea.vmem %s14, %s1184
      $region92: #{lw_ae_forward.1} parent=83 // pred_fallthru
        _
    $region84: #{lw_ae_forward.1} parent=5 // pred_fallthru
      _
  $region6: #{lw_ae_forward.1} parent=0 // loop_footer
    %s25 = sadd.s32 1, %s21
  $region7: #{lw_ae_forward.1} parent=0 // loop_footer_branch
    %20 = sbr.rel target = $region3
  $region8: #{lw_ae_forward.1} parent=0 // loop_exit
    _

// kernel: lw_ae_forward.1
$region0: #{lw_ae_forward.1}
  #allocation0 [shape = 'u32[]', space=smem, size = 0x4, offset = 0x4, fixed_abs, tag = 'smem constant byte address 0x4 - core index']
  #allocation1 [shape = 'u32[144,128]{1,0:T(1,128)}', space=vmem, size = 0x12000, scoped, tag = 'internal scratch']
  %s0 = inlined_call_operand.vmem [shape: bf16[32,128], index: 0, kind: input, shape index: {}]
  %s1 = inlined_call_operand.vmem [shape: bf16[128,128], index: 1, kind: input, shape index: {}]
  %s2 = inlined_call_operand.vmem [shape: f32[1,128], index: 2, kind: input, shape index: {}]
  %s3 = inlined_call_operand.vmem [shape: bf16[128,128], index: 3, kind: input, shape index: {}]
  %s4 = inlined_call_operand.vmem [shape: f32[1,128], index: 4, kind: input, shape index: {}]
  %s5 = inlined_call_operand.vmem [shape: bf16[128,128], index: 5, kind: input, shape index: {}]
  %s6 = inlined_call_operand.vmem [shape: f32[1,128], index: 6, kind: input, shape index: {}]
  %s7 = inlined_call_operand.vmem [shape: bf16[128,128], index: 7, kind: input, shape index: {}]
  %s8 = inlined_call_operand.vmem [shape: f32[1,128], index: 8, kind: input, shape index: {}]
  %s9 = inlined_call_operand.vmem [shape: bf16[128,128], index: 9, kind: input, shape index: {}]
  %s10 = inlined_call_operand.vmem [shape: f32[1,128], index: 10, kind: input, shape index: {}]
  %s11 = inlined_call_operand.vmem [shape: bf16[128,128], index: 11, kind: input, shape index: {}]
  %s12 = inlined_call_operand.vmem [shape: f32[1,128], index: 12, kind: input, shape index: {}]
  %s13 = inlined_call_operand.vmem [shape: f32[32,128], index: 13, kind: output, shape index: {0}]
  %s14 = inlined_call_operand.vmem [shape: f32[32,128], index: 14, kind: output, shape index: {1}]
  %15 = xla_tuple %s13, %s14
  %s16 = sld [smem:[#allocation0]]
  $region93: #{lw_ae_forward.1} parent=0
    _
  %s18 = ssub.s32 1, %s16
  %s19 = scalar_select 0, %s18, %s16
  loop: start=0, step=1, limit=6
  $region2: #{lw_ae_forward.1} parent=0 // loop_pre_header
    _
  $region3: #{lw_ae_forward.1} parent=0 // loop_header
    %s21 = sphi 0, %s25
    %p22 = scmp.ge.s32.totalorder %s21, 6
    %s31 = sphi 0, %s33
    %s34 = sphi 0, %s31
    %s35 = sphi 0, %s34
    %s51 = sphi 0, %s35
    %s55 = sphi 0, %s55
    %s57 = sphi 0, %s55
    %s58 = sphi 0, %s57
    %s72 = sphi 0, %s58
    %s76 = sphi 0, %s76
    %s78 = sphi 0, %s76
    %s79 = sphi 0, %s78
    %s93 = sphi 0, %s79
    %s97 = sphi 0, %s97
    %s99 = sphi 0, %s97
    %s100 = sphi 0, %s99
    %s114 = sphi 0, %s100
    %s118 = sphi 0, %s118
    %s120 = sphi 0, %s118
    %s121 = sphi 0, %s120
    %s135 = sphi 0, %s121
    %s139 = sphi 0, %s139
    %s141 = sphi 0, %s139
    %s142 = sphi 0, %s141
    %s156 = sphi 0, %s142
    %s160 = sphi 0, %s160
    %s162 = sphi 0, %s160
    %s163 = sphi 0, %s162
    %s177 = sphi 0, %s163
    %s181 = sphi 0, %s181
    %s183 = sphi 0, %s181
    %s184 = sphi 0, %s183
    %s198 = sphi 0, %s184
    %s202 = sphi 0, %s202
    %s204 = sphi 0, %s202
    %s205 = sphi 0, %s204
    %s219 = sphi 0, %s205
    %s223 = sphi 0, %s223
    %s225 = sphi 0, %s223
    %s226 = sphi 0, %s225
    %s240 = sphi 0, %s226
    %s244 = sphi 0, %s244
    %s246 = sphi 0, %s244
    %s247 = sphi 0, %s246
    %s261 = sphi 0, %s247
    %s265 = sphi 0, %s265
    %s267 = sphi 0, %s265
    %s268 = sphi 0, %s267
    %s282 = sphi 0, %s268
    %s286 = sphi 0, %s286
    %s288 = sphi 0, %s286
    %s289 = sphi 0, %s288
    %s303 = sphi 0, %s289
    %s309 = sphi 0, %s311
    %s312 = sphi 0, %s309
    %s313 = sphi 0, %s312
    %s329 = sphi 0, %s313
    %s335 = sphi 0, %s337
    %s338 = sphi 0, %s335
    %s339 = sphi 0, %s338
    %s355 = sphi 0, %s339
  $region4: #{lw_ae_forward.1} parent=0 // loop_header_branch
    %24 = sbr.rel (%p22) target = $region8
  $region5: #{lw_ae_forward.1} parent=0 // loop_body
    %s26 = ssub.s32 %s21, 1
    %s27 = ssub.s32 %s21, 2
    %s28 = sadd.s32 %s21, 1
    %s29 = ssub.s32 %s21, %s28
    %p30 = scmp.eq.s32.totalorder %s29, 0
    %s32 = sadd.s32 %s31, 1
    %s33 = scalar_select %p30, %s31, %s32
    %p36 = pneg %p30
    %p37 = scmp.eq.s32.totalorder %s21, 3
    %p38 = por %p36, %p37
    %p39 = scmp.ne.s32.totalorder %s31, %s34
    %p40 = scmp.eq.s32.totalorder %s21, 0
    %p41 = por %p39, %p40
    %p42 = scmp.ne.s32.totalorder %s31, %s34
    %p43 = scmp.eq.s32.totalorder %s26, 3
    %p44 = por %p42, %p43
    %p45 = scmp.ne.s32.totalorder %s34, %s35
    %p46 = scmp.eq.s32.totalorder %s26, 0
    %p47 = por %p45, %p46
    %p48 = scmp.ne.s32.totalorder %s34, %s35
    %p49 = scmp.eq.s32.totalorder %s27, 3
    %p50 = por %p48, %p49
    %p52 = scmp.ne.s32.totalorder %s35, %s51
    %p53 = scmp.eq.s32.totalorder %s27, 0
    %p54 = por %p52, %p53
    %s56 = sadd.s32 %s55, 1
    %p59 = scmp.eq.s32.totalorder %s21, 3
    %p60 = scmp.ne.s32.totalorder %s55, %s57
    %p61 = scmp.eq.s32.totalorder %s21, 0
    %p62 = por %p60, %p61
    %p63 = scmp.ne.s32.totalorder %s55, %s57
    %p64 = scmp.eq.s32.totalorder %s26, 3
    %p65 = por %p63, %p64
    %p66 = scmp.ne.s32.totalorder %s57, %s58
    %p67 = scmp.eq.s32.totalorder %s26, 0
    %p68 = por %p66, %p67
    %p69 = scmp.ne.s32.totalorder %s57, %s58
    %p70 = scmp.eq.s32.totalorder %s27, 3
    %p71 = por %p69, %p70
    %p73 = scmp.ne.s32.totalorder %s58, %s72
    %p74 = scmp.eq.s32.totalorder %s27, 0
    %p75 = por %p73, %p74
    %s77 = sadd.s32 %s76, 1
    %p80 = scmp.eq.s32.totalorder %s21, 3
    %p81 = scmp.ne.s32.totalorder %s76, %s78
    %p82 = scmp.eq.s32.totalorder %s21, 0
    %p83 = por %p81, %p82
    %p84 = scmp.ne.s32.totalorder %s76, %s78
    %p85 = scmp.eq.s32.totalorder %s26, 3
    %p86 = por %p84, %p85
    %p87 = scmp.ne.s32.totalorder %s78, %s79
    %p88 = scmp.eq.s32.totalorder %s26, 0
    %p89 = por %p87, %p88
    %p90 = scmp.ne.s32.totalorder %s78, %s79
    %p91 = scmp.eq.s32.totalorder %s27, 3
    %p92 = por %p90, %p91
    %p94 = scmp.ne.s32.totalorder %s79, %s93
    %p95 = scmp.eq.s32.totalorder %s27, 0
    %p96 = por %p94, %p95
    %s98 = sadd.s32 %s97, 1
    %p101 = scmp.eq.s32.totalorder %s21, 3
    %p102 = scmp.ne.s32.totalorder %s97, %s99
    %p103 = scmp.eq.s32.totalorder %s21, 0
    %p104 = por %p102, %p103
    %p105 = scmp.ne.s32.totalorder %s97, %s99
    %p106 = scmp.eq.s32.totalorder %s26, 3
    %p107 = por %p105, %p106
    %p108 = scmp.ne.s32.totalorder %s99, %s100
    %p109 = scmp.eq.s32.totalorder %s26, 0
    %p110 = por %p108, %p109
    %p111 = scmp.ne.s32.totalorder %s99, %s100
    %p112 = scmp.eq.s32.totalorder %s27, 3
    %p113 = por %p111, %p112
    %p115 = scmp.ne.s32.totalorder %s100, %s114
    %p116 = scmp.eq.s32.totalorder %s27, 0
    %p117 = por %p115, %p116
    %s119 = sadd.s32 %s118, 1
    %p122 = scmp.eq.s32.totalorder %s21, 3
    %p123 = scmp.ne.s32.totalorder %s118, %s120
    %p124 = scmp.eq.s32.totalorder %s21, 0
    %p125 = por %p123, %p124
    %p126 = scmp.ne.s32.totalorder %s118, %s120
    %p127 = scmp.eq.s32.totalorder %s26, 3
    %p128 = por %p126, %p127
    %p129 = scmp.ne.s32.totalorder %s120, %s121
    %p130 = scmp.eq.s32.totalorder %s26, 0
    %p131 = por %p129, %p130
    %p132 = scmp.ne.s32.totalorder %s120, %s121
    %p133 = scmp.eq.s32.totalorder %s27, 3
    %p134 = por %p132, %p133
    %p136 = scmp.ne.s32.totalorder %s121, %s135
    %p137 = scmp.eq.s32.totalorder %s27, 0
    %p138 = por %p136, %p137
    %s140 = sadd.s32 %s139, 1
    %p143 = scmp.eq.s32.totalorder %s21, 3
    %p144 = scmp.ne.s32.totalorder %s139, %s141
    %p145 = scmp.eq.s32.totalorder %s21, 0
    %p146 = por %p144, %p145
    %p147 = scmp.ne.s32.totalorder %s139, %s141
    %p148 = scmp.eq.s32.totalorder %s26, 3
    %p149 = por %p147, %p148
    %p150 = scmp.ne.s32.totalorder %s141, %s142
    %p151 = scmp.eq.s32.totalorder %s26, 0
    %p152 = por %p150, %p151
    %p153 = scmp.ne.s32.totalorder %s141, %s142
    %p154 = scmp.eq.s32.totalorder %s27, 3
    %p155 = por %p153, %p154
    %p157 = scmp.ne.s32.totalorder %s142, %s156
    %p158 = scmp.eq.s32.totalorder %s27, 0
    %p159 = por %p157, %p158
    %s161 = sadd.s32 %s160, 1
    %p164 = scmp.eq.s32.totalorder %s21, 3
    %p165 = scmp.ne.s32.totalorder %s160, %s162
    %p166 = scmp.eq.s32.totalorder %s21, 0
    %p167 = por %p165, %p166
    %p168 = scmp.ne.s32.totalorder %s160, %s162
    %p169 = scmp.eq.s32.totalorder %s26, 3
    %p170 = por %p168, %p169
    %p171 = scmp.ne.s32.totalorder %s162, %s163
    %p172 = scmp.eq.s32.totalorder %s26, 0
    %p173 = por %p171, %p172
    %p174 = scmp.ne.s32.totalorder %s162, %s163
    %p175 = scmp.eq.s32.totalorder %s27, 3
    %p176 = por %p174, %p175
    %p178 = scmp.ne.s32.totalorder %s163, %s177
    %p179 = scmp.eq.s32.totalorder %s27, 0
    %p180 = por %p178, %p179
    %s182 = sadd.s32 %s181, 1
    %p185 = scmp.eq.s32.totalorder %s21, 3
    %p186 = scmp.ne.s32.totalorder %s181, %s183
    %p187 = scmp.eq.s32.totalorder %s21, 0
    %p188 = por %p186, %p187
    %p189 = scmp.ne.s32.totalorder %s181, %s183
    %p190 = scmp.eq.s32.totalorder %s26, 3
    %p191 = por %p189, %p190
    %p192 = scmp.ne.s32.totalorder %s183, %s184
    %p193 = scmp.eq.s32.totalorder %s26, 0
    %p194 = por %p192, %p193
    %p195 = scmp.ne.s32.totalorder %s183, %s184
    %p196 = scmp.eq.s32.totalorder %s27, 3
    %p197 = por %p195, %p196
    %p199 = scmp.ne.s32.totalorder %s184, %s198
    %p200 = scmp.eq.s32.totalorder %s27, 0
    %p201 = por %p199, %p200
    %s203 = sadd.s32 %s202, 1
    %p206 = scmp.eq.s32.totalorder %s21, 3
    %p207 = scmp.ne.s32.totalorder %s202, %s204
    %p208 = scmp.eq.s32.totalorder %s21, 0
    %p209 = por %p207, %p208
    %p210 = scmp.ne.s32.totalorder %s202, %s204
    %p211 = scmp.eq.s32.totalorder %s26, 3
    %p212 = por %p210, %p211
    %p213 = scmp.ne.s32.totalorder %s204, %s205
    %p214 = scmp.eq.s32.totalorder %s26, 0
    %p215 = por %p213, %p214
    %p216 = scmp.ne.s32.totalorder %s204, %s205
    %p217 = scmp.eq.s32.totalorder %s27, 3
    %p218 = por %p216, %p217
    %p220 = scmp.ne.s32.totalorder %s205, %s219
    %p221 = scmp.eq.s32.totalorder %s27, 0
    %p222 = por %p220, %p221
    %s224 = sadd.s32 %s223, 1
    %p227 = scmp.eq.s32.totalorder %s21, 3
    %p228 = scmp.ne.s32.totalorder %s223, %s225
    %p229 = scmp.eq.s32.totalorder %s21, 0
    %p230 = por %p228, %p229
    %p231 = scmp.ne.s32.totalorder %s223, %s225
    %p232 = scmp.eq.s32.totalorder %s26, 3
    %p233 = por %p231, %p232
    %p234 = scmp.ne.s32.totalorder %s225, %s226
    %p235 = scmp.eq.s32.totalorder %s26, 0
    %p236 = por %p234, %p235
    %p237 = scmp.ne.s32.totalorder %s225, %s226
    %p238 = scmp.eq.s32.totalorder %s27, 3
    %p239 = por %p237, %p238
    %p241 = scmp.ne.s32.totalorder %s226, %s240
    %p242 = scmp.eq.s32.totalorder %s27, 0
    %p243 = por %p241, %p242
    %s245 = sadd.s32 %s244, 1
    %p248 = scmp.eq.s32.totalorder %s21, 3
    %p249 = scmp.ne.s32.totalorder %s244, %s246
    %p250 = scmp.eq.s32.totalorder %s21, 0
    %p251 = por %p249, %p250
    %p252 = scmp.ne.s32.totalorder %s244, %s246
    %p253 = scmp.eq.s32.totalorder %s26, 3
    %p254 = por %p252, %p253
    %p255 = scmp.ne.s32.totalorder %s246, %s247
    %p256 = scmp.eq.s32.totalorder %s26, 0
    %p257 = por %p255, %p256
    %p258 = scmp.ne.s32.totalorder %s246, %s247
    %p259 = scmp.eq.s32.totalorder %s27, 3
    %p260 = por %p258, %p259
    %p262 = scmp.ne.s32.totalorder %s247, %s261
    %p263 = scmp.eq.s32.totalorder %s27, 0
    %p264 = por %p262, %p263
    %s266 = sadd.s32 %s265, 1
    %p269 = scmp.eq.s32.totalorder %s21, 3
    %p270 = scmp.ne.s32.totalorder %s265, %s267
    %p271 = scmp.eq.s32.totalorder %s21, 0
    %p272 = por %p270, %p271
    %p273 = scmp.ne.s32.totalorder %s265, %s267
    %p274 = scmp.eq.s32.totalorder %s26, 3
    %p275 = por %p273, %p274
    %p276 = scmp.ne.s32.totalorder %s267, %s268
    %p277 = scmp.eq.s32.totalorder %s26, 0
    %p278 = por %p276, %p277
    %p279 = scmp.ne.s32.totalorder %s267, %s268
    %p280 = scmp.eq.s32.totalorder %s27, 3
    %p281 = por %p279, %p280
    %p283 = scmp.ne.s32.totalorder %s268, %s282
    %p284 = scmp.eq.s32.totalorder %s27, 0
    %p285 = por %p283, %p284
    %s287 = sadd.s32 %s286, 1
    %p290 = scmp.eq.s32.totalorder %s21, 3
    %p291 = scmp.ne.s32.totalorder %s286, %s288
    %p292 = scmp.eq.s32.totalorder %s21, 0
    %p293 = por %p291, %p292
    %p294 = scmp.ne.s32.totalorder %s286, %s288
    %p295 = scmp.eq.s32.totalorder %s26, 3
    %p296 = por %p294, %p295
    %p297 = scmp.ne.s32.totalorder %s288, %s289
    %p298 = scmp.eq.s32.totalorder %s26, 0
    %p299 = por %p297, %p298
    %p300 = scmp.ne.s32.totalorder %s288, %s289
    %p301 = scmp.eq.s32.totalorder %s27, 3
    %p302 = por %p300, %p301
    %p304 = scmp.ne.s32.totalorder %s289, %s303
    %p305 = scmp.eq.s32.totalorder %s27, 0
    %p306 = por %p304, %p305
    %s307 = ssub.s32 %s21, %s28
    %p308 = scmp.eq.s32.totalorder %s307, 0
    %s310 = sadd.s32 %s309, 1
    %s311 = scalar_select %p308, %s309, %s310
    %p314 = pneg %p308
    %p315 = scmp.eq.s32.totalorder %s21, 3
    %p316 = por %p314, %p315
    %p317 = scmp.ne.s32.totalorder %s309, %s312
    %p318 = scmp.eq.s32.totalorder %s21, 0
    %p319 = por %p317, %p318
    %p320 = scmp.ne.s32.totalorder %s309, %s312
    %p321 = scmp.eq.s32.totalorder %s26, 3
    %p322 = por %p320, %p321
    %p323 = scmp.ne.s32.totalorder %s312, %s313
    %p324 = scmp.eq.s32.totalorder %s26, 0
    %p325 = por %p323, %p324
    %p326 = scmp.ne.s32.totalorder %s312, %s313
    %p327 = scmp.eq.s32.totalorder %s27, 3
    %p328 = por %p326, %p327
    %p330 = scmp.ne.s32.totalorder %s313, %s329
    %p331 = scmp.eq.s32.totalorder %s27, 0
    %p332 = por %p330, %p331
    %s333 = ssub.s32 %s21, %s28
    %p334 = scmp.eq.s32.totalorder %s333, 0
    %s336 = sadd.s32 %s335, 1
    %s337 = scalar_select %p334, %s335, %s336
    %p340 = pneg %p334
    %p341 = scmp.eq.s32.totalorder %s21, 3
    %p342 = por %p340, %p341
    %p343 = scmp.ne.s32.totalorder %s335, %s338
    %p344 = scmp.eq.s32.totalorder %s21, 0
    %p345 = por %p343, %p344
    %p346 = scmp.ne.s32.totalorder %s335, %s338
    %p347 = scmp.eq.s32.totalorder %s26, 3
    %p348 = por %p346, %p347
    %p349 = scmp.ne.s32.totalorder %s338, %s339
    %p350 = scmp.eq.s32.totalorder %s26, 0
    %p351 = por %p349, %p350
    %p352 = scmp.ne.s32.totalorder %s338, %s339
    %p353 = scmp.eq.s32.totalorder %s27, 3
    %p354 = por %p352, %p353
    %p356 = scmp.ne.s32.totalorder %s339, %s355
    %p357 = scmp.eq.s32.totalorder %s27, 0
    %p358 = por %p356, %p357
    %p359 = scmp.le.s32.totalorder 1, %s21
    %p360 = scmp.lt.s32.totalorder %s21, 5
    %p361 = pnand %p359, %p360
    %p362 = pneg %p361
    // Predicated region
    $region9: #{lw_ae_forward.1} parent=5 // pred_check
      _
    $region10: #{lw_ae_forward.1} parent=5 // pred_check_branch
      %364 = sbr.rel (%p361) target = $region12
    $region11: #{lw_ae_forward.1} parent=5 // pred_region
      %s365 = ssub.s32 %s21, 1
      // Predicated region
      $region13: #{lw_ae_forward.1} parent=11 // pred_check
        %p366 = pneg %p68
      $region14: #{lw_ae_forward.1} parent=11 // pred_check_branch
        %368 = sbr.rel (%p366) target = $region16
      $region15: #{lw_ae_forward.1} parent=11 // pred_region
        _
      $region16: #{lw_ae_forward.1} parent=11 // pred_fallthru
        _
      // Predicated region
      $region17: #{lw_ae_forward.1} parent=11 // pred_check
        %p369 = pneg %p89
      $region18: #{lw_ae_forward.1} parent=11 // pred_check_branch
        %371 = sbr.rel (%p369) target = $region20
      $region19: #{lw_ae_forward.1} parent=11 // pred_region
        _
      $region20: #{lw_ae_forward.1} parent=11 // pred_fallthru
        _
      // Predicated region
      $region21: #{lw_ae_forward.1} parent=11 // pred_check
        %p372 = pneg %p110
      $region22: #{lw_ae_forward.1} parent=11 // pred_check_branch
        %374 = sbr.rel (%p372) target = $region24
      $region23: #{lw_ae_forward.1} parent=11 // pred_region
        _
      $region24: #{lw_ae_forward.1} parent=11 // pred_fallthru
        _
      // Predicated region
      $region25: #{lw_ae_forward.1} parent=11 // pred_check
        %p375 = pneg %p131
      $region26: #{lw_ae_forward.1} parent=11 // pred_check_branch
        %377 = sbr.rel (%p375) target = $region28
      $region27: #{lw_ae_forward.1} parent=11 // pred_region
        _
      $region28: #{lw_ae_forward.1} parent=11 // pred_fallthru
        _
      // Predicated region
      $region29: #{lw_ae_forward.1} parent=11 // pred_check
        %p378 = pneg %p152
      $region30: #{lw_ae_forward.1} parent=11 // pred_check_branch
        %380 = sbr.rel (%p378) target = $region32
      $region31: #{lw_ae_forward.1} parent=11 // pred_region
        _
      $region32: #{lw_ae_forward.1} parent=11 // pred_fallthru
        _
      // Predicated region
      $region33: #{lw_ae_forward.1} parent=11 // pred_check
        %p381 = pneg %p173
      $region34: #{lw_ae_forward.1} parent=11 // pred_check_branch
        %383 = sbr.rel (%p381) target = $region36
      $region35: #{lw_ae_forward.1} parent=11 // pred_region
        _
      $region36: #{lw_ae_forward.1} parent=11 // pred_fallthru
        _
      // Predicated region
      $region37: #{lw_ae_forward.1} parent=11 // pred_check
        %p384 = pneg %p194
      $region38: #{lw_ae_forward.1} parent=11 // pred_check_branch
        %386 = sbr.rel (%p384) target = $region40
      $region39: #{lw_ae_forward.1} parent=11 // pred_region
        _
      $region40: #{lw_ae_forward.1} parent=11 // pred_fallthru
        _
      // Predicated region
      $region41: #{lw_ae_forward.1} parent=11 // pred_check
        %p387 = pneg %p215
      $region42: #{lw_ae_forward.1} parent=11 // pred_check_branch
        %389 = sbr.rel (%p387) target = $region44
      $region43: #{lw_ae_forward.1} parent=11 // pred_region
        _
      $region44: #{lw_ae_forward.1} parent=11 // pred_fallthru
        _
      // Predicated region
      $region45: #{lw_ae_forward.1} parent=11 // pred_check
        %p390 = pneg %p236
      $region46: #{lw_ae_forward.1} parent=11 // pred_check_branch
        %392 = sbr.rel (%p390) target = $region48
      $region47: #{lw_ae_forward.1} parent=11 // pred_region
        _
      $region48: #{lw_ae_forward.1} parent=11 // pred_fallthru
        _
      // Predicated region
      $region49: #{lw_ae_forward.1} parent=11 // pred_check
        %p393 = pneg %p257
      $region50: #{lw_ae_forward.1} parent=11 // pred_check_branch
        %395 = sbr.rel (%p393) target = $region52
      $region51: #{lw_ae_forward.1} parent=11 // pred_region
        _
      $region52: #{lw_ae_forward.1} parent=11 // pred_fallthru
        _
      // Predicated region
      $region53: #{lw_ae_forward.1} parent=11 // pred_check
        %p396 = pneg %p278
      $region54: #{lw_ae_forward.1} parent=11 // pred_check_branch
        %398 = sbr.rel (%p396) target = $region56
      $region55: #{lw_ae_forward.1} parent=11 // pred_region
        _
      $region56: #{lw_ae_forward.1} parent=11 // pred_fallthru
        _
      // Predicated region
      $region57: #{lw_ae_forward.1} parent=11 // pred_check
        %p399 = pneg %p299
      $region58: #{lw_ae_forward.1} parent=11 // pred_check_branch
        %401 = sbr.rel (%p399) target = $region60
      $region59: #{lw_ae_forward.1} parent=11 // pred_region
        _
      $region60: #{lw_ae_forward.1} parent=11 // pred_fallthru
        _
    $region12: #{lw_ae_forward.1} parent=5 // pred_fallthru
      _
    %p402 = scmp.lt.s32.totalorder %s21, 4
    // Predicated region
    $region61: #{lw_ae_forward.1} parent=5 // pred_check
      %p403 = pneg %p402
    $region62: #{lw_ae_forward.1} parent=5 // pred_check_branch
      %405 = sbr.rel (%p403) target = $region64
    $region63: #{lw_ae_forward.1} parent=5 // pred_region
      // Predicated region
      $region65: #{lw_ae_forward.1} parent=63 // pred_check
        %p406 = pneg %p41
      $region66: #{lw_ae_forward.1} parent=63 // pred_check_branch
        %408 = sbr.rel (%p406) target = $region68
      $region67: #{lw_ae_forward.1} parent=63 // pred_region
        %p409 = scmp.lt.s32.totalorder %s21, 3
        %s410 = scalar_select %p409, %s21, 3
        %s411 = smul.addr %s410, 4
        %s412 = scalar_lea.vmem %s0, %s411
      $region68: #{lw_ae_forward.1} parent=63 // pred_fallthru
        _
    $region64: #{lw_ae_forward.1} parent=5 // pred_fallthru
      _
    %p413 = scmp.le.s32.totalorder 1, %s21
    %p414 = scmp.lt.s32.totalorder %s21, 5
    %p415 = pnand %p413, %p414
    %p416 = pneg %p415
    // Predicated region
    $region69: #{lw_ae_forward.1} parent=5 // pred_check
      _
    $region70: #{lw_ae_forward.1} parent=5 // pred_check_branch
      %418 = sbr.rel (%p415) target = $region72
    $region71: #{lw_ae_forward.1} parent=5 // pred_region
      %s419 = ssub.s32 %s21, 1
      %p420 = scmp.lt.s32.totalorder %s26, 3
      %s421 = scalar_select %p420, %s26, 3
      %s422 = smul.addr %s421, 4
      %s423 = scalar_lea.vmem %s0, %s422
      %p424 = pneg %p47
      %p425 = pneg %p44
      %p426 = pneg %p68
      %p427 = pneg %p65
      %p428 = pneg %p89
      %p429 = pneg %p86
      %p430 = pneg %p110
      %p431 = pneg %p107
      %p432 = pneg %p131
      %p433 = pneg %p128
      %p434 = pneg %p152
      %p435 = pneg %p149
      %p436 = pneg %p173
      %p437 = pneg %p170
      %p438 = pneg %p194
      %p439 = pneg %p191
      %p440 = pneg %p215
      %p441 = pneg %p212
      %p442 = pneg %p236
      %p443 = pneg %p233
      %p444 = pneg %p257
      %p445 = pneg %p254
      %p446 = pneg %p278
      %p447 = pneg %p275
      %p448 = pneg %p299
      %p449 = pneg %p296
      %p450 = pneg %p325
      %p451 = pneg %p322
      %p452 = scmp.lt.s32.totalorder %s26, 3
      %s453 = scalar_select %p452, %s26, 3
      %s454 = smul.addr %s453, 8
      %s455 = scalar_lea.vmem %s13, %s454
      %p456 = pneg %p351
      %p457 = pneg %p348
      %p458 = scmp.lt.s32.totalorder %s26, 3
      %s459 = scalar_select %p458, %s26, 3
      %s460 = smul.addr %s459, 8
      %s461 = scalar_lea.vmem %s14, %s460
      %p462 = scmp.lt.s32.totalorder %s26, 3
      %s463 = scalar_select %p462, %s26, 3
      %s464 = smul.addr %s463, 4
      %s465 = scalar_lea.vmem %s0, %s464
      %p466 = scmp.lt.s32.totalorder %s26, 3
      %s467 = scalar_select %p466, %s26, 3
      %s468 = smul.addr %s467, 8
      %s469 = scalar_lea.vmem %s13, %s468
      %p470 = scmp.lt.s32.totalorder %s26, 3
      %s471 = scalar_select %p470, %s26, 3
      %s472 = smul.addr %s471, 8
      %s473 = scalar_lea.vmem %s14, %s472
      %v475 = vld [vmem:[%s465] sm:$0xf]
      %v476 = vld [vmem:[%s1] sm:$0xf]
      %v477 = vld [vmem:[%s1 + $0x4] sm:$0xf]
      %v478 = vld [vmem:[%s1 + $0x8] sm:$0xf]
      %v479 = vld [vmem:[%s1 + $0xc] sm:$0xf]
      %v480 = vld [vmem:[%s1 + $0x10] sm:$0xf]
      %v481 = vld [vmem:[%s1 + $0x14] sm:$0xf]
      %v482 = vld [vmem:[%s1 + $0x18] sm:$0xf]
      %v483 = vld [vmem:[%s1 + $0x1c] sm:$0xf]
      %v484 = vld [vmem:[%s1 + $0x20] sm:$0xf]
      %v485 = vld [vmem:[%s1 + $0x24] sm:$0xf]
      %v486 = vld [vmem:[%s1 + $0x28] sm:$0xf]
      %v487 = vld [vmem:[%s1 + $0x2c] sm:$0xf]
      %v488 = vld [vmem:[%s1 + $0x30] sm:$0xf]
      %v489 = vld [vmem:[%s1 + $0x34] sm:$0xf]
      %v490 = vld [vmem:[%s1 + $0x38] sm:$0xf]
      %v491 = vld [vmem:[%s1 + $0x3c] sm:$0xf]
      %v492 = vld [vmem:[%s2] sm:$0x1]
      %v494 = vlaneseq
      %v495 = vshrl.u32 %v494, 7
      %v496 = vsub.s32 0, %v495
      %v497 = vrot.slane %v492, %v496
      %v515 = vunpack.c.l.b16 %v476
      %v516 = vunpack.c.l.b16 %v477
      %v517 = vunpack.c.l.b16 %v478
      %v518 = vunpack.c.l.b16 %v479
      %v519 = vunpack.c.l.b16 %v480
      %v520 = vunpack.c.l.b16 %v481
      %v521 = vunpack.c.l.b16 %v482
      %v522 = vunpack.c.l.b16 %v483
      %v523 = vunpack.c.l.b16 %v484
      %v524 = vunpack.c.l.b16 %v485
      %v525 = vunpack.c.l.b16 %v486
      %v526 = vunpack.c.l.b16 %v487
      %v527 = vunpack.c.l.b16 %v488
      %v528 = vunpack.c.l.b16 %v489
      %v529 = vunpack.c.l.b16 %v490
      %v530 = vunpack.c.l.b16 %v491
      %v531 = vpack.c.b16 %v516, %v515
      %v532 = vpack.c.b16 %v518, %v517
      %v533 = vpack.c.b16 %v520, %v519
      %v534 = vpack.c.b16 %v522, %v521
      %v535 = vpack.c.b16 %v524, %v523
      %v536 = vpack.c.b16 %v526, %v525
      %v537 = vpack.c.b16 %v528, %v527
      %v538 = vpack.c.b16 %v530, %v529
      %547 = vmatprep.subr.bf16.mxu0 0
      %548 = vmatpush1.bf16.msra.mxu0 %v538
      %549 = vmatprep.subr.bf16.mxu0 0
      %550 = vmatpush1.bf16.msra.mxu0 %v537
      %551 = vmatprep.subr.bf16.mxu0 0
      %552 = vmatpush1.bf16.msra.mxu0 %v536
      %553 = vmatprep.subr.bf16.mxu0 0
      %554 = vmatpush1.bf16.msra.mxu0 %v535
      %555 = vmatprep.subr.bf16.mxu0 0
      %556 = vmatpush1.bf16.msra.mxu0 %v534
      %557 = vmatprep.subr.bf16.mxu0 0
      %558 = vmatpush1.bf16.msra.mxu0 %v533
      %559 = vmatprep.subr.bf16.mxu0 0
      %560 = vmatpush1.bf16.msra.mxu0 %v532
      %561 = vmatprep.subr.bf16.mxu0 0
      %562 = vmatpush1.bf16.msra.mxu0 %v531
      %563 = vmatprep.subr.bf16.mxu0 0
      %564 = vmatpush2.bf16.msra.mxu0 0
      %565 = vmatprep.subr.bf16.mxu0 0
      %566 = vmatpush2.bf16.msra.mxu0 0
      %567 = vmatprep.subr.bf16.mxu0 0
      %568 = vmatpush2.bf16.msra.mxu0 0
      %569 = vmatprep.subr.bf16.mxu0 0
      %570 = vmatpush2.bf16.msra.mxu0 0
      %571 = vmatprep.subr.bf16.mxu0 0
      %572 = vmatpush2.bf16.msra.mxu0 0
      %573 = vmatprep.subr.bf16.mxu0 0
      %574 = vmatpush2.bf16.msra.mxu0 0
      %575 = vmatprep.subr.bf16.mxu0 0
      %576 = vmatpush2.bf16.msra.mxu0 0
      %577 = vmatprep.subr.bf16.mxu0 0
      %578 = vmatpush2.bf16.msra.mxu0 0
      %579 = vmatprep.mubr.bf16.mxu0 0
      %580 = vmatmul.mubr.bf16.gmra.mxu0 %v475
      %v581 = vpop.f32.mrf.mxu0
      %v582 = vadd.f32 %v497, %v581
      %v583 = vpop.f32.mrf.mxu0
      %v584 = vpop.f32.mrf.mxu0
      %v585 = vpop.f32.mrf.mxu0
      %586 = vdwg.mxu0
      %v587 = vmax.f32 %v582, 0.0
      %v588 = vld [vmem:[%s3] sm:$0xf]
      %v589 = vld [vmem:[%s3 + $0x4] sm:$0xf]
      %v590 = vld [vmem:[%s3 + $0x8] sm:$0xf]
      %v591 = vld [vmem:[%s3 + $0xc] sm:$0xf]
      %v592 = vld [vmem:[%s3 + $0x10] sm:$0xf]
      %v593 = vld [vmem:[%s3 + $0x14] sm:$0xf]
      %v594 = vld [vmem:[%s3 + $0x18] sm:$0xf]
      %v595 = vld [vmem:[%s3 + $0x1c] sm:$0xf]
      %v596 = vld [vmem:[%s3 + $0x20] sm:$0xf]
      %v597 = vld [vmem:[%s3 + $0x24] sm:$0xf]
      %v598 = vld [vmem:[%s3 + $0x28] sm:$0xf]
      %v599 = vld [vmem:[%s3 + $0x2c] sm:$0xf]
      %v600 = vld [vmem:[%s3 + $0x30] sm:$0xf]
      %v601 = vld [vmem:[%s3 + $0x34] sm:$0xf]
      %v602 = vld [vmem:[%s3 + $0x38] sm:$0xf]
      %v603 = vld [vmem:[%s3 + $0x3c] sm:$0xf]
      %v604 = vpack.c.bf16 %v587, %v587
      %v605 = vld [vmem:[%s4] sm:$0x1]
      %v607 = vlaneseq
      %v608 = vshrl.u32 %v607, 7
      %v609 = vsub.s32 0, %v608
      %v610 = vrot.slane %v605, %v609
      %v628 = vunpack.c.l.b16 %v588
      %v629 = vunpack.c.l.b16 %v589
      %v630 = vunpack.c.l.b16 %v590
      %v631 = vunpack.c.l.b16 %v591
      %v632 = vunpack.c.l.b16 %v592
      %v633 = vunpack.c.l.b16 %v593
      %v634 = vunpack.c.l.b16 %v594
      %v635 = vunpack.c.l.b16 %v595
      %v636 = vunpack.c.l.b16 %v596
      %v637 = vunpack.c.l.b16 %v597
      %v638 = vunpack.c.l.b16 %v598
      %v639 = vunpack.c.l.b16 %v599
      %v640 = vunpack.c.l.b16 %v600
      %v641 = vunpack.c.l.b16 %v601
      %v642 = vunpack.c.l.b16 %v602
      %v643 = vunpack.c.l.b16 %v603
      %v644 = vpack.c.b16 %v629, %v628
      %v645 = vpack.c.b16 %v631, %v630
      %v646 = vpack.c.b16 %v633, %v632
      %v647 = vpack.c.b16 %v635, %v634
      %v648 = vpack.c.b16 %v637, %v636
      %v649 = vpack.c.b16 %v639, %v638
      %v650 = vpack.c.b16 %v641, %v640
      %v651 = vpack.c.b16 %v643, %v642
      %660 = vmatprep.subr.bf16.mxu0 0
      %661 = vmatpush1.bf16.msra.mxu0 %v651
      %662 = vmatprep.subr.bf16.mxu0 0
      %663 = vmatpush1.bf16.msra.mxu0 %v650
      %664 = vmatprep.subr.bf16.mxu0 0
      %665 = vmatpush1.bf16.msra.mxu0 %v649
      %666 = vmatprep.subr.bf16.mxu0 0
      %667 = vmatpush1.bf16.msra.mxu0 %v648
      %668 = vmatprep.subr.bf16.mxu0 0
      %669 = vmatpush1.bf16.msra.mxu0 %v647
      %670 = vmatprep.subr.bf16.mxu0 0
      %671 = vmatpush1.bf16.msra.mxu0 %v646
      %672 = vmatprep.subr.bf16.mxu0 0
      %673 = vmatpush1.bf16.msra.mxu0 %v645
      %674 = vmatprep.subr.bf16.mxu0 0
      %675 = vmatpush1.bf16.msra.mxu0 %v644
      %676 = vmatprep.subr.bf16.mxu0 0
      %677 = vmatpush2.bf16.msra.mxu0 0
      %678 = vmatprep.subr.bf16.mxu0 0
      %679 = vmatpush2.bf16.msra.mxu0 0
      %680 = vmatprep.subr.bf16.mxu0 0
      %681 = vmatpush2.bf16.msra.mxu0 0
      %682 = vmatprep.subr.bf16.mxu0 0
      %683 = vmatpush2.bf16.msra.mxu0 0
      %684 = vmatprep.subr.bf16.mxu0 0
      %685 = vmatpush2.bf16.msra.mxu0 0
      %686 = vmatprep.subr.bf16.mxu0 0
      %687 = vmatpush2.bf16.msra.mxu0 0
      %688 = vmatprep.subr.bf16.mxu0 0
      %689 = vmatpush2.bf16.msra.mxu0 0
      %690 = vmatprep.subr.bf16.mxu0 0
      %691 = vmatpush2.bf16.msra.mxu0 0
      %692 = vmatprep.mubr.bf16.mxu0 0
      %693 = vmatmul.mubr.bf16.gmra.mxu0 %v604
      %v694 = vpop.f32.mrf.mxu0
      %v695 = vadd.f32 %v610, %v694
      %v696 = vpop.f32.mrf.mxu0
      %v697 = vpop.f32.mrf.mxu0
      %v698 = vpop.f32.mrf.mxu0
      %699 = vdwg.mxu0
      %v700 = vmax.f32 %v695, 0.0
      %v701 = vld [vmem:[%s5] sm:$0xf]
      %v702 = vld [vmem:[%s5 + $0x4] sm:$0xf]
      %v703 = vld [vmem:[%s5 + $0x8] sm:$0xf]
      %v704 = vld [vmem:[%s5 + $0xc] sm:$0xf]
      %v705 = vld [vmem:[%s5 + $0x10] sm:$0xf]
      %v706 = vld [vmem:[%s5 + $0x14] sm:$0xf]
      %v707 = vld [vmem:[%s5 + $0x18] sm:$0xf]
      %v708 = vld [vmem:[%s5 + $0x1c] sm:$0xf]
      %v709 = vld [vmem:[%s5 + $0x20] sm:$0xf]
      %v710 = vld [vmem:[%s5 + $0x24] sm:$0xf]
      %v711 = vld [vmem:[%s5 + $0x28] sm:$0xf]
      %v712 = vld [vmem:[%s5 + $0x2c] sm:$0xf]
      %v713 = vld [vmem:[%s5 + $0x30] sm:$0xf]
      %v714 = vld [vmem:[%s5 + $0x34] sm:$0xf]
      %v715 = vld [vmem:[%s5 + $0x38] sm:$0xf]
      %v716 = vld [vmem:[%s5 + $0x3c] sm:$0xf]
      %v717 = vpack.c.bf16 %v700, %v700
      %v718 = vld [vmem:[%s6] sm:$0x1]
      %v720 = vlaneseq
      %v721 = vshrl.u32 %v720, 7
      %v722 = vsub.s32 0, %v721
      %v723 = vrot.slane %v718, %v722
      %v741 = vunpack.c.l.b16 %v701
      %v742 = vunpack.c.l.b16 %v702
      %v743 = vunpack.c.l.b16 %v703
      %v744 = vunpack.c.l.b16 %v704
      %v745 = vunpack.c.l.b16 %v705
      %v746 = vunpack.c.l.b16 %v706
      %v747 = vunpack.c.l.b16 %v707
      %v748 = vunpack.c.l.b16 %v708
      %v749 = vunpack.c.l.b16 %v709
      %v750 = vunpack.c.l.b16 %v710
      %v751 = vunpack.c.l.b16 %v711
      %v752 = vunpack.c.l.b16 %v712
      %v753 = vunpack.c.l.b16 %v713
      %v754 = vunpack.c.l.b16 %v714
      %v755 = vunpack.c.l.b16 %v715
      %v756 = vunpack.c.l.b16 %v716
      %v757 = vpack.c.b16 %v742, %v741
      %v758 = vpack.c.b16 %v744, %v743
      %v759 = vpack.c.b16 %v746, %v745
      %v760 = vpack.c.b16 %v748, %v747
      %v761 = vpack.c.b16 %v750, %v749
      %v762 = vpack.c.b16 %v752, %v751
      %v763 = vpack.c.b16 %v754, %v753
      %v764 = vpack.c.b16 %v756, %v755
      %773 = vmatprep.subr.bf16.mxu0 0
      %774 = vmatpush1.bf16.msra.mxu0 %v764
      %775 = vmatprep.subr.bf16.mxu0 0
      %776 = vmatpush1.bf16.msra.mxu0 %v763
      %777 = vmatprep.subr.bf16.mxu0 0
      %778 = vmatpush1.bf16.msra.mxu0 %v762
      %779 = vmatprep.subr.bf16.mxu0 0
      %780 = vmatpush1.bf16.msra.mxu0 %v761
      %781 = vmatprep.subr.bf16.mxu0 0
      %782 = vmatpush1.bf16.msra.mxu0 %v760
      %783 = vmatprep.subr.bf16.mxu0 0
      %784 = vmatpush1.bf16.msra.mxu0 %v759
      %785 = vmatprep.subr.bf16.mxu0 0
      %786 = vmatpush1.bf16.msra.mxu0 %v758
      %787 = vmatprep.subr.bf16.mxu0 0
      %788 = vmatpush1.bf16.msra.mxu0 %v757
      %789 = vmatprep.subr.bf16.mxu0 0
      %790 = vmatpush2.bf16.msra.mxu0 0
      %791 = vmatprep.subr.bf16.mxu0 0
      %792 = vmatpush2.bf16.msra.mxu0 0
      %793 = vmatprep.subr.bf16.mxu0 0
      %794 = vmatpush2.bf16.msra.mxu0 0
      %795 = vmatprep.subr.bf16.mxu0 0
      %796 = vmatpush2.bf16.msra.mxu0 0
      %797 = vmatprep.subr.bf16.mxu0 0
      %798 = vmatpush2.bf16.msra.mxu0 0
      %799 = vmatprep.subr.bf16.mxu0 0
      %800 = vmatpush2.bf16.msra.mxu0 0
      %801 = vmatprep.subr.bf16.mxu0 0
      %802 = vmatpush2.bf16.msra.mxu0 0
      %803 = vmatprep.subr.bf16.mxu0 0
      %804 = vmatpush2.bf16.msra.mxu0 0
      %805 = vmatprep.mubr.bf16.mxu0 0
      %806 = vmatmul.mubr.bf16.gmra.mxu0 %v717
      %v807 = vpop.f32.mrf.mxu0
      %v808 = vadd.f32 %v723, %v807
      %v809 = vpop.f32.mrf.mxu0
      %v810 = vpop.f32.mrf.mxu0
      %v811 = vpop.f32.mrf.mxu0
      %812 = vdwg.mxu0
      %813 = vst [vmem:[%s469] sm:$0xff] %v808
      %v814 = vld [vmem:[%s7] sm:$0xf]
      %v815 = vld [vmem:[%s7 + $0x4] sm:$0xf]
      %v816 = vld [vmem:[%s7 + $0x8] sm:$0xf]
      %v817 = vld [vmem:[%s7 + $0xc] sm:$0xf]
      %v818 = vld [vmem:[%s7 + $0x10] sm:$0xf]
      %v819 = vld [vmem:[%s7 + $0x14] sm:$0xf]
      %v820 = vld [vmem:[%s7 + $0x18] sm:$0xf]
      %v821 = vld [vmem:[%s7 + $0x1c] sm:$0xf]
      %v822 = vld [vmem:[%s7 + $0x20] sm:$0xf]
      %v823 = vld [vmem:[%s7 + $0x24] sm:$0xf]
      %v824 = vld [vmem:[%s7 + $0x28] sm:$0xf]
      %v825 = vld [vmem:[%s7 + $0x2c] sm:$0xf]
      %v826 = vld [vmem:[%s7 + $0x30] sm:$0xf]
      %v827 = vld [vmem:[%s7 + $0x34] sm:$0xf]
      %v828 = vld [vmem:[%s7 + $0x38] sm:$0xf]
      %v829 = vld [vmem:[%s7 + $0x3c] sm:$0xf]
      %v830 = vpack.c.bf16 %v808, %v808
      %v831 = vld [vmem:[%s8] sm:$0x1]
      %v833 = vlaneseq
      %v834 = vshrl.u32 %v833, 7
      %v835 = vsub.s32 0, %v834
      %v836 = vrot.slane %v831, %v835
      %v854 = vunpack.c.l.b16 %v814
      %v855 = vunpack.c.l.b16 %v815
      %v856 = vunpack.c.l.b16 %v816
      %v857 = vunpack.c.l.b16 %v817
      %v858 = vunpack.c.l.b16 %v818
      %v859 = vunpack.c.l.b16 %v819
      %v860 = vunpack.c.l.b16 %v820
      %v861 = vunpack.c.l.b16 %v821
      %v862 = vunpack.c.l.b16 %v822
      %v863 = vunpack.c.l.b16 %v823
      %v864 = vunpack.c.l.b16 %v824
      %v865 = vunpack.c.l.b16 %v825
      %v866 = vunpack.c.l.b16 %v826
      %v867 = vunpack.c.l.b16 %v827
      %v868 = vunpack.c.l.b16 %v828
      %v869 = vunpack.c.l.b16 %v829
      %v870 = vpack.c.b16 %v855, %v854
      %v871 = vpack.c.b16 %v857, %v856
      %v872 = vpack.c.b16 %v859, %v858
      %v873 = vpack.c.b16 %v861, %v860
      %v874 = vpack.c.b16 %v863, %v862
      %v875 = vpack.c.b16 %v865, %v864
      %v876 = vpack.c.b16 %v867, %v866
      %v877 = vpack.c.b16 %v869, %v868
      %886 = vmatprep.subr.bf16.mxu0 0
      %887 = vmatpush1.bf16.msra.mxu0 %v877
      %888 = vmatprep.subr.bf16.mxu0 0
      %889 = vmatpush1.bf16.msra.mxu0 %v876
      %890 = vmatprep.subr.bf16.mxu0 0
      %891 = vmatpush1.bf16.msra.mxu0 %v875
      %892 = vmatprep.subr.bf16.mxu0 0
      %893 = vmatpush1.bf16.msra.mxu0 %v874
      %894 = vmatprep.subr.bf16.mxu0 0
      %895 = vmatpush1.bf16.msra.mxu0 %v873
      %896 = vmatprep.subr.bf16.mxu0 0
      %897 = vmatpush1.bf16.msra.mxu0 %v872
      %898 = vmatprep.subr.bf16.mxu0 0
      %899 = vmatpush1.bf16.msra.mxu0 %v871
      %900 = vmatprep.subr.bf16.mxu0 0
      %901 = vmatpush1.bf16.msra.mxu0 %v870
      %902 = vmatprep.subr.bf16.mxu0 0
      %903 = vmatpush2.bf16.msra.mxu0 0
      %904 = vmatprep.subr.bf16.mxu0 0
      %905 = vmatpush2.bf16.msra.mxu0 0
      %906 = vmatprep.subr.bf16.mxu0 0
      %907 = vmatpush2.bf16.msra.mxu0 0
      %908 = vmatprep.subr.bf16.mxu0 0
      %909 = vmatpush2.bf16.msra.mxu0 0
      %910 = vmatprep.subr.bf16.mxu0 0
      %911 = vmatpush2.bf16.msra.mxu0 0
      %912 = vmatprep.subr.bf16.mxu0 0
      %913 = vmatpush2.bf16.msra.mxu0 0
      %914 = vmatprep.subr.bf16.mxu0 0
      %915 = vmatpush2.bf16.msra.mxu0 0
      %916 = vmatprep.subr.bf16.mxu0 0
      %917 = vmatpush2.bf16.msra.mxu0 0
      %918 = vmatprep.mubr.bf16.mxu0 0
      %919 = vmatmul.mubr.bf16.gmra.mxu0 %v830
      %v920 = vpop.f32.mrf.mxu0
      %v921 = vadd.f32 %v836, %v920
      %v922 = vpop.f32.mrf.mxu0
      %v923 = vpop.f32.mrf.mxu0
      %v924 = vpop.f32.mrf.mxu0
      %925 = vdwg.mxu0
      %v926 = vmax.f32 %v921, 0.0
      %v927 = vld [vmem:[%s9] sm:$0xf]
      %v928 = vld [vmem:[%s9 + $0x4] sm:$0xf]
      %v929 = vld [vmem:[%s9 + $0x8] sm:$0xf]
      %v930 = vld [vmem:[%s9 + $0xc] sm:$0xf]
      %v931 = vld [vmem:[%s9 + $0x10] sm:$0xf]
      %v932 = vld [vmem:[%s9 + $0x14] sm:$0xf]
      %v933 = vld [vmem:[%s9 + $0x18] sm:$0xf]
      %v934 = vld [vmem:[%s9 + $0x1c] sm:$0xf]
      %v935 = vld [vmem:[%s9 + $0x20] sm:$0xf]
      %v936 = vld [vmem:[%s9 + $0x24] sm:$0xf]
      %v937 = vld [vmem:[%s9 + $0x28] sm:$0xf]
      %v938 = vld [vmem:[%s9 + $0x2c] sm:$0xf]
      %v939 = vld [vmem:[%s9 + $0x30] sm:$0xf]
      %v940 = vld [vmem:[%s9 + $0x34] sm:$0xf]
      %v941 = vld [vmem:[%s9 + $0x38] sm:$0xf]
      %v942 = vld [vmem:[%s9 + $0x3c] sm:$0xf]
      %v943 = vpack.c.bf16 %v926, %v926
      %v944 = vld [vmem:[%s10] sm:$0x1]
      %v946 = vlaneseq
      %v947 = vshrl.u32 %v946, 7
      %v948 = vsub.s32 0, %v947
      %v949 = vrot.slane %v944, %v948
      %v967 = vunpack.c.l.b16 %v927
      %v968 = vunpack.c.l.b16 %v928
      %v969 = vunpack.c.l.b16 %v929
      %v970 = vunpack.c.l.b16 %v930
      %v971 = vunpack.c.l.b16 %v931
      %v972 = vunpack.c.l.b16 %v932
      %v973 = vunpack.c.l.b16 %v933
      %v974 = vunpack.c.l.b16 %v934
      %v975 = vunpack.c.l.b16 %v935
      %v976 = vunpack.c.l.b16 %v936
      %v977 = vunpack.c.l.b16 %v937
      %v978 = vunpack.c.l.b16 %v938
      %v979 = vunpack.c.l.b16 %v939
      %v980 = vunpack.c.l.b16 %v940
      %v981 = vunpack.c.l.b16 %v941
      %v982 = vunpack.c.l.b16 %v942
      %v983 = vpack.c.b16 %v968, %v967
      %v984 = vpack.c.b16 %v970, %v969
      %v985 = vpack.c.b16 %v972, %v971
      %v986 = vpack.c.b16 %v974, %v973
      %v987 = vpack.c.b16 %v976, %v975
      %v988 = vpack.c.b16 %v978, %v977
      %v989 = vpack.c.b16 %v980, %v979
      %v990 = vpack.c.b16 %v982, %v981
      %999 = vmatprep.subr.bf16.mxu0 0
      %1000 = vmatpush1.bf16.msra.mxu0 %v990
      %1001 = vmatprep.subr.bf16.mxu0 0
      %1002 = vmatpush1.bf16.msra.mxu0 %v989
      %1003 = vmatprep.subr.bf16.mxu0 0
      %1004 = vmatpush1.bf16.msra.mxu0 %v988
      %1005 = vmatprep.subr.bf16.mxu0 0
      %1006 = vmatpush1.bf16.msra.mxu0 %v987
      %1007 = vmatprep.subr.bf16.mxu0 0
      %1008 = vmatpush1.bf16.msra.mxu0 %v986
      %1009 = vmatprep.subr.bf16.mxu0 0
      %1010 = vmatpush1.bf16.msra.mxu0 %v985
      %1011 = vmatprep.subr.bf16.mxu0 0
      %1012 = vmatpush1.bf16.msra.mxu0 %v984
      %1013 = vmatprep.subr.bf16.mxu0 0
      %1014 = vmatpush1.bf16.msra.mxu0 %v983
      %1015 = vmatprep.subr.bf16.mxu0 0
      %1016 = vmatpush2.bf16.msra.mxu0 0
      %1017 = vmatprep.subr.bf16.mxu0 0
      %1018 = vmatpush2.bf16.msra.mxu0 0
      %1019 = vmatprep.subr.bf16.mxu0 0
      %1020 = vmatpush2.bf16.msra.mxu0 0
      %1021 = vmatprep.subr.bf16.mxu0 0
      %1022 = vmatpush2.bf16.msra.mxu0 0
      %1023 = vmatprep.subr.bf16.mxu0 0
      %1024 = vmatpush2.bf16.msra.mxu0 0
      %1025 = vmatprep.subr.bf16.mxu0 0
      %1026 = vmatpush2.bf16.msra.mxu0 0
      %1027 = vmatprep.subr.bf16.mxu0 0
      %1028 = vmatpush2.bf16.msra.mxu0 0
      %1029 = vmatprep.subr.bf16.mxu0 0
      %1030 = vmatpush2.bf16.msra.mxu0 0
      %1031 = vmatprep.mubr.bf16.mxu0 0
      %1032 = vmatmul.mubr.bf16.gmra.mxu0 %v943
      %v1033 = vpop.f32.mrf.mxu0
      %v1034 = vadd.f32 %v949, %v1033
      %v1035 = vpop.f32.mrf.mxu0
      %v1036 = vpop.f32.mrf.mxu0
      %v1037 = vpop.f32.mrf.mxu0
      %1038 = vdwg.mxu0
      %v1039 = vmax.f32 %v1034, 0.0
      %v1040 = vld [vmem:[%s11] sm:$0xf]
      %v1041 = vld [vmem:[%s11 + $0x4] sm:$0xf]
      %v1042 = vld [vmem:[%s11 + $0x8] sm:$0xf]
      %v1043 = vld [vmem:[%s11 + $0xc] sm:$0xf]
      %v1044 = vld [vmem:[%s11 + $0x10] sm:$0xf]
      %v1045 = vld [vmem:[%s11 + $0x14] sm:$0xf]
      %v1046 = vld [vmem:[%s11 + $0x18] sm:$0xf]
      %v1047 = vld [vmem:[%s11 + $0x1c] sm:$0xf]
      %v1048 = vld [vmem:[%s11 + $0x20] sm:$0xf]
      %v1049 = vld [vmem:[%s11 + $0x24] sm:$0xf]
      %v1050 = vld [vmem:[%s11 + $0x28] sm:$0xf]
      %v1051 = vld [vmem:[%s11 + $0x2c] sm:$0xf]
      %v1052 = vld [vmem:[%s11 + $0x30] sm:$0xf]
      %v1053 = vld [vmem:[%s11 + $0x34] sm:$0xf]
      %v1054 = vld [vmem:[%s11 + $0x38] sm:$0xf]
      %v1055 = vld [vmem:[%s11 + $0x3c] sm:$0xf]
      %v1056 = vpack.c.bf16 %v1039, %v1039
      %v1057 = vld [vmem:[%s12] sm:$0x1]
      %v1059 = vlaneseq
      %v1060 = vshrl.u32 %v1059, 7
      %v1061 = vsub.s32 0, %v1060
      %v1062 = vrot.slane %v1057, %v1061
      %v1080 = vunpack.c.l.b16 %v1040
      %v1081 = vunpack.c.l.b16 %v1041
      %v1082 = vunpack.c.l.b16 %v1042
      %v1083 = vunpack.c.l.b16 %v1043
      %v1084 = vunpack.c.l.b16 %v1044
      %v1085 = vunpack.c.l.b16 %v1045
      %v1086 = vunpack.c.l.b16 %v1046
      %v1087 = vunpack.c.l.b16 %v1047
      %v1088 = vunpack.c.l.b16 %v1048
      %v1089 = vunpack.c.l.b16 %v1049
      %v1090 = vunpack.c.l.b16 %v1050
      %v1091 = vunpack.c.l.b16 %v1051
      %v1092 = vunpack.c.l.b16 %v1052
      %v1093 = vunpack.c.l.b16 %v1053
      %v1094 = vunpack.c.l.b16 %v1054
      %v1095 = vunpack.c.l.b16 %v1055
      %v1096 = vpack.c.b16 %v1081, %v1080
      %v1097 = vpack.c.b16 %v1083, %v1082
      %v1098 = vpack.c.b16 %v1085, %v1084
      %v1099 = vpack.c.b16 %v1087, %v1086
      %v1100 = vpack.c.b16 %v1089, %v1088
      %v1101 = vpack.c.b16 %v1091, %v1090
      %v1102 = vpack.c.b16 %v1093, %v1092
      %v1103 = vpack.c.b16 %v1095, %v1094
      %1112 = vmatprep.subr.bf16.mxu0 0
      %1113 = vmatpush1.bf16.msra.mxu0 %v1103
      %1114 = vmatprep.subr.bf16.mxu0 0
      %1115 = vmatpush1.bf16.msra.mxu0 %v1102
      %1116 = vmatprep.subr.bf16.mxu0 0
      %1117 = vmatpush1.bf16.msra.mxu0 %v1101
      %1118 = vmatprep.subr.bf16.mxu0 0
      %1119 = vmatpush1.bf16.msra.mxu0 %v1100
      %1120 = vmatprep.subr.bf16.mxu0 0
      %1121 = vmatpush1.bf16.msra.mxu0 %v1099
      %1122 = vmatprep.subr.bf16.mxu0 0
      %1123 = vmatpush1.bf16.msra.mxu0 %v1098
      %1124 = vmatprep.subr.bf16.mxu0 0
      %1125 = vmatpush1.bf16.msra.mxu0 %v1097
      %1126 = vmatprep.subr.bf16.mxu0 0
      %1127 = vmatpush1.bf16.msra.mxu0 %v1096
      %1128 = vmatprep.subr.bf16.mxu0 0
      %1129 = vmatpush2.bf16.msra.mxu0 0
      %1130 = vmatprep.subr.bf16.mxu0 0
      %1131 = vmatpush2.bf16.msra.mxu0 0
      %1132 = vmatprep.subr.bf16.mxu0 0
      %1133 = vmatpush2.bf16.msra.mxu0 0
      %1134 = vmatprep.subr.bf16.mxu0 0
      %1135 = vmatpush2.bf16.msra.mxu0 0
      %1136 = vmatprep.subr.bf16.mxu0 0
      %1137 = vmatpush2.bf16.msra.mxu0 0
      %1138 = vmatprep.subr.bf16.mxu0 0
      %1139 = vmatpush2.bf16.msra.mxu0 0
      %1140 = vmatprep.subr.bf16.mxu0 0
      %1141 = vmatpush2.bf16.msra.mxu0 0
      %1142 = vmatprep.subr.bf16.mxu0 0
      %1143 = vmatpush2.bf16.msra.mxu0 0
      %1144 = vmatprep.mubr.bf16.mxu0 0
      %1145 = vmatmul.mubr.bf16.gmra.mxu0 %v1056
      %v1146 = vpop.f32.mrf.mxu0
      %v1147 = vadd.f32 %v1062, %v1146
      %v1148 = vpop.f32.mrf.mxu0
      %v1149 = vpop.f32.mrf.mxu0
      %v1150 = vpop.f32.mrf.mxu0
      %1151 = vdwg.mxu0
      %1152 = vst [vmem:[%s473] sm:$0xff] %v1147
      %p1153 = scmp.lt.s32.totalorder %s26, 3
      %s1154 = scalar_select %p1153, %s26, 3
      %s1155 = smul.addr %s1154, 8
      %s1156 = scalar_lea.vmem %s13, %s1155
      %p1157 = scmp.lt.s32.totalorder %s26, 3
      %s1158 = scalar_select %p1157, %s26, 3
      %s1159 = smul.addr %s1158, 8
      %s1160 = scalar_lea.vmem %s14, %s1159
      // Predicated region
      $region73: #{lw_ae_forward.1} parent=71 // pred_check
        %p1161 = pneg %p322
      $region74: #{lw_ae_forward.1} parent=71 // pred_check_branch
        %1163 = sbr.rel (%p1161) target = $region76
      $region75: #{lw_ae_forward.1} parent=71 // pred_region
        _
      $region76: #{lw_ae_forward.1} parent=71 // pred_fallthru
        _
      // Predicated region
      $region77: #{lw_ae_forward.1} parent=71 // pred_check
        %p1164 = pneg %p348
      $region78: #{lw_ae_forward.1} parent=71 // pred_check_branch
        %1166 = sbr.rel (%p1164) target = $region80
      $region79: #{lw_ae_forward.1} parent=71 // pred_region
        _
      $region80: #{lw_ae_forward.1} parent=71 // pred_fallthru
        _
    $region72: #{lw_ae_forward.1} parent=5 // pred_fallthru
      _
    %p1167 = scmp.le.s32.totalorder 2, %s21
    // Predicated region
    $region81: #{lw_ae_forward.1} parent=5 // pred_check
      %p1168 = pneg %p1167
    $region82: #{lw_ae_forward.1} parent=5 // pred_check_branch
      %1170 = sbr.rel (%p1168) target = $region84
    $region83: #{lw_ae_forward.1} parent=5 // pred_region
      %s1171 = ssub.s32 %s21, 2
      // Predicated region
      $region85: #{lw_ae_forward.1} parent=83 // pred_check
        %p1172 = pneg %p328
      $region86: #{lw_ae_forward.1} parent=83 // pred_check_branch
        %1174 = sbr.rel (%p1172) target = $region88
      $region87: #{lw_ae_forward.1} parent=83 // pred_region
        %p1175 = scmp.lt.s32.totalorder %s27, 3
        %s1176 = scalar_select %p1175, %s27, 3
        %s1177 = smul.addr %s1176, 8
        %s1178 = scalar_lea.vmem %s13, %s1177
      $region88: #{lw_ae_forward.1} parent=83 // pred_fallthru
        _
      // Predicated region
      $region89: #{lw_ae_forward.1} parent=83 // pred_check
        %p1179 = pneg %p354
      $region90: #{lw_ae_forward.1} parent=83 // pred_check_branch
        %1181 = sbr.rel (%p1179) target = $region92
      $region91: #{lw_ae_forward.1} parent=83 // pred_region
        %p1182 = scmp.lt.s32.totalorder %s27, 3
        %s1183 = scalar_select %p1182, %s27, 3
        %s1184 = smul.addr %s1183, 8
        %s1185 = scalar_lea.vmem %s14, %s1184
      $region92: #{lw_ae_forward.1} parent=83 // pred_fallthru
        _
    $region84: #{lw_ae_forward.1} parent=5 // pred_fallthru
      _
  $region6: #{lw_ae_forward.1} parent=0 // loop_footer
    %s25 = sadd.s32 1, %s21
  $region7: #{lw_ae_forward.1} parent=0 // loop_footer_branch
    %20 = sbr.rel target = $region3
  $region8: #{lw_ae_forward.1} parent=0 // loop_exit
    _

</llo_original>
